<compile_context>
chip_gen: v7x
topology: tpu7x:2x2x1
jax: 0.10.0
libtpu: 0.0.40
codegen_flags: <defaults>
</compile_context>

<pallas_src>
import functools

import jax
import jax.numpy as jnp
from jax.experimental import pallas as pl
from jax.experimental.pallas import tpu as pltpu

INPUT_DIM = 2
HIDDEN_DIM = 200
HIDDEN_PAD = 256   # 200 -> 256: 2 full lane tiles, matches 256-wide MXU on v6e/v7x
OUTPUT_DIM = 1


def hnn_mlp_kernel(xt_ref, w1t_ref, b1_ref, w2t_ref, b2_ref, w3_ref, o_ref,
                   *, matmul_dtype):
    # Activations kept transposed: (hidden on sublanes, batch on lanes).
    xt = xt_ref[...]                                    # (2, bm)        f32
    w1t = w1t_ref[...]                                  # (HIDDEN_PAD,2) f32

    # ---- Layer 1: K=2 contraction as a VPU outer product (keeps MXU free) ----
    z1 = (w1t[:, 0:1] * xt[0:1, :]
          + w1t[:, 1:2] * xt[1:2, :]
          + b1_ref[...])                                # (HP, bm) f32
    h1 = jnp.tanh(z1)                                   # EUP, f32

    # ---- Layer 2: the only real matmul -> MXU (bf16 inputs on v6e/v7x) ----
    z2 = jnp.dot(w2t_ref[...], h1.astype(matmul_dtype),
                 preferred_element_type=jnp.float32) + b2_ref[...]
    h2 = jnp.tanh(z2)                                   # (HP, bm) f32

    # ---- Layer 3: N=1 "matmul" as VPU multiply + cross-sublane reduce ----
    # Result is (1, bm): batch on the lane axis -> lane-dense, unmasked stores.
    o_ref[...] = jnp.sum(h2 * w3_ref[...], axis=0,
                         keepdims=True).astype(o_ref.dtype)


def _prep_params(params, matmul_dtype):
    """Transpose weights to (out, in) layout and zero-pad hidden 200 -> 256."""
    w1, b1, w2, b2, w3 = params         # (2,200), (1,200), (200,200), (1,200), (200,1)
    H, HP = HIDDEN_DIM, HIDDEN_PAD
    f32 = jnp.float32
    w1t = jnp.zeros((HP, INPUT_DIM), f32).at[:H, :].set(w1.T.astype(f32))
    b1c = jnp.zeros((HP, 1), f32).at[:H, :].set(b1.reshape(H, 1).astype(f32))
    w2t = jnp.zeros((HP, HP), f32).at[:H, :H].set(w2.T.astype(f32))
    b2c = jnp.zeros((HP, 1), f32).at[:H, :].set(b2.reshape(H, 1).astype(f32))
    w3c = jnp.zeros((HP, 1), f32).at[:H, :].set(w3.reshape(H, 1).astype(f32))
    w2t = w2t.astype(matmul_dtype)      # bf16 doubles MXU throughput on v6e/v7x
    return w1t, b1c, w2t, b2c, w3c


def hnn_forward(x, params, *, bm=256, matmul_dtype=jnp.float32):
    """H_theta = MLP(x).  x: (B, INPUT_DIM) -> (B, OUTPUT_DIM)."""
    B = x.shape[0]
    # Batch tile: multiple of 128 lanes, capped at 512.
    bm = max(128, (min(int(bm), 512) // 128) * 128)
    B_pad = pl.cdiv(B, bm) * bm
    grid = (B_pad // bm,)

    # Wrapper-side layout plumbing (cheap XLA ops): put the batch on lanes.
    xt = jnp.zeros((INPUT_DIM, B_pad), jnp.float32).at[:, :B].set(
        x.astype(jnp.float32).T)
    w1t, b1c, w2t, b2c, w3c = _prep_params(params, matmul_dtype)

    def invariant(shape):               # grid-invariant (weights/biases)
        return pl.BlockSpec(shape, lambda i: (0, 0))

    out_row = pl.pallas_call(
        functools.partial(hnn_mlp_kernel, matmul_dtype=matmul_dtype),
        out_shape=jax.ShapeDtypeStruct((1, B_pad), jnp.float32),
        grid_spec=pltpu.PrefetchScalarGridSpec(
            num_scalar_prefetch=0,
            grid=grid,
            in_specs=[
                pl.BlockSpec((INPUT_DIM, bm), lambda i: (0, i)),   # x.T tile
                invariant(w1t.shape),    # (256, 2)
                invariant(b1c.shape),    # (256, 1)
                invariant(w2t.shape),    # (256, 256)
                invariant(b2c.shape),    # (256, 1)
                invariant(w3c.shape),    # (256, 1)
            ],
            out_specs=pl.BlockSpec((1, bm), lambda i: (0, i)),     # lane-dense
        ),
        compiler_params=pltpu.CompilerParams(
            # Batch tiles are independent -> shard over v7x's 2 TensorCores.
            dimension_semantics=("parallel",),
        ),
    )(xt, w1t, b1c, w2t, b2c, w3c)

    return out_row[0, :B].reshape(B, OUTPUT_DIM).astype(x.dtype)


def init_params(key):
    """Deterministic PyTorch-Linear-style init: U(-1/sqrt(fan_in), 1/sqrt(fan_in))."""
    k1, k2, k3, k4, k5 = jax.random.split(key, 5)

    def unif(k, shape, fan_in):
        bound = 1.0 / jnp.sqrt(jnp.float32(fan_in))
        return jax.random.uniform(k, shape, jnp.float32, -bound, bound)

    w1 = unif(k1, (INPUT_DIM, HIDDEN_DIM), INPUT_DIM)
    b1 = unif(k2, (1, HIDDEN_DIM), INPUT_DIM)
    w2 = unif(k3, (HIDDEN_DIM, HIDDEN_DIM), HIDDEN_DIM)
    b2 = unif(k4, (1, HIDDEN_DIM), HIDDEN_DIM)
    w3 = unif(k5, (HIDDEN_DIM, OUTPUT_DIM), HIDDEN_DIM)  # bias=False on last layer
    return (w1, b1, w2, b2, w3)


def hnn_forward_ref(x, params):
    w1, b1, w2, b2, w3 = params
    h1 = jnp.tanh(x @ w1 + b1)
    h2 = jnp.tanh(h1 @ w2 + b2)
    return h2 @ w3


if __name__ == "__main__":
    key = jax.random.PRNGKey(0)
    kx, kp = jax.random.split(key)

    # Small problem; B deliberately not a tile multiple (exercises batch padding)
    # and padded grid has 2 steps (one per v7x TensorCore).
    B = 300
    x = jax.random.normal(kx, (B, INPUT_DIM), dtype=jnp.float32)  # (q, p) pairs
    params = init_params(kp)

    ref = hnn_forward_ref(x, params)

    # f32 MXU-input path.
    out_f32 = jax.block_until_ready(hnn_forward(x, params, matmul_dtype=jnp.float32))
    assert out_f32.shape == (B, OUTPUT_DIM)
    assert jnp.allclose(out_f32, ref, atol=1e-4, rtol=1e-4), "f32 mismatch vs reference"

    # bf16 MXU-input fast path (v6e/v7x); f32 accumulation, looser tolerance.
    out_bf16 = jax.block_until_ready(hnn_forward(x, params, matmul_dtype=jnp.bfloat16))
    assert out_bf16.shape == (B, OUTPUT_DIM)
    assert jnp.allclose(out_bf16, ref, atol=5e-2, rtol=5e-2), "bf16 mismatch vs reference"

    # TODO(synk): time_derivative()/canoncial_map need autograd of H_theta w.r.t. qp
    # (torch.autograd.grad); use jax.grad around hnn_forward outside the kernel.
    print("KERNEL_OK")
</pallas_src>

<mosaic_0001>
module attributes {stable_mosaic.version = 11 : i64} {
  func.func @hnn_mlp_kernel(%arg0: i32, %arg1: memref<2x256xf32, #tpu.memory_space<vmem>>, %arg2: memref<256x2xf32, #tpu.memory_space<vmem>>, %arg3: memref<256x1xf32, #tpu.memory_space<vmem>>, %arg4: memref<256x256xf32, #tpu.memory_space<vmem>>, %arg5: memref<256x1xf32, #tpu.memory_space<vmem>>, %arg6: memref<256x1xf32, #tpu.memory_space<vmem>>, %arg7: memref<1x256xf32, #tpu.memory_space<vmem>>) attributes {dimension_semantics = [#tpu.dimension_semantics<parallel>], iteration_bounds = array<i64: 2>, scalar_prefetch = 0 : i64, scratch_operands = 0 : i64, tpu.core_type = #tpu.core_type<tc>, window_params = [{transform_indices = @transform_0, window_bounds = array<i64: 2, 256>}, {pipeline_mode = #tpu.pipeline_mode<synchronous>, transform_indices = @transform_1, window_bounds = array<i64: 256, 2>}, {pipeline_mode = #tpu.pipeline_mode<synchronous>, transform_indices = @transform_2, window_bounds = array<i64: 256, 1>}, {pipeline_mode = #tpu.pipeline_mode<synchronous>, transform_indices = @transform_3, window_bounds = array<i64: 256, 256>}, {pipeline_mode = #tpu.pipeline_mode<synchronous>, transform_indices = @transform_4, window_bounds = array<i64: 256, 1>}, {pipeline_mode = #tpu.pipeline_mode<synchronous>, transform_indices = @transform_5, window_bounds = array<i64: 256, 1>}, {transform_indices = @transform_6, window_bounds = array<i64: 1, 256>}]} {
    %c0 = arith.constant 0 : index
    %c0_0 = arith.constant 0 : index
    %0 = vector.load %arg1[%c0, %c0_0] : memref<2x256xf32, #tpu.memory_space<vmem>>, vector<2x256xf32>
    %c0_1 = arith.constant 0 : index
    %c0_2 = arith.constant 0 : index
    %1 = vector.load %arg2[%c0_1, %c0_2] : memref<256x2xf32, #tpu.memory_space<vmem>>, vector<256x2xf32>
    %2 = vector.extract_strided_slice %1 {offsets = [0, 0], sizes = [256, 1], strides = [1, 1]} : vector<256x2xf32> to vector<256x1xf32>
    %3 = vector.extract_strided_slice %0 {offsets = [0, 0], sizes = [1, 256], strides = [1, 1]} : vector<2x256xf32> to vector<1x256xf32>
    %4 = vector.broadcast %2 : vector<256x1xf32> to vector<256x256xf32>
    %5 = vector.broadcast %3 : vector<1x256xf32> to vector<256x256xf32>
    %6 = arith.mulf %4, %5 : vector<256x256xf32>
    %7 = vector.extract_strided_slice %1 {offsets = [0, 1], sizes = [256, 1], strides = [1, 1]} : vector<256x2xf32> to vector<256x1xf32>
    %8 = vector.extract_strided_slice %0 {offsets = [1, 0], sizes = [1, 256], strides = [1, 1]} : vector<2x256xf32> to vector<1x256xf32>
    %9 = vector.broadcast %7 : vector<256x1xf32> to vector<256x256xf32>
    %10 = vector.broadcast %8 : vector<1x256xf32> to vector<256x256xf32>
    %11 = arith.mulf %9, %10 : vector<256x256xf32>
    %12 = arith.addf %6, %11 : vector<256x256xf32>
    %c0_3 = arith.constant 0 : index
    %c0_4 = arith.constant 0 : index
    %13 = vector.load %arg3[%c0_3, %c0_4] : memref<256x1xf32, #tpu.memory_space<vmem>>, vector<256x1xf32>
    %14 = vector.broadcast %13 : vector<256x1xf32> to vector<256x256xf32>
    %15 = arith.addf %12, %14 : vector<256x256xf32>
    %16 = math.tanh %15 : vector<256x256xf32>
    %c0_5 = arith.constant 0 : index
    %c0_6 = arith.constant 0 : index
    %17 = vector.load %arg4[%c0_5, %c0_6] : memref<256x256xf32, #tpu.memory_space<vmem>>, vector<256x256xf32>
    %cst = arith.constant dense<0.000000e+00> : vector<256x256xf32>
    %18 = tpu.matmul %17, %16, %cst {dimension_numbers = #tpu.dot_dimension_numbers<[1], [0], [0], [1], [0, 0, 1, 1], [], []>} : vector<256x256xf32>, vector<256x256xf32>, vector<256x256xf32> -> vector<256x256xf32>
    %c0_7 = arith.constant 0 : index
    %c0_8 = arith.constant 0 : index
    %19 = vector.load %arg5[%c0_7, %c0_8] : memref<256x1xf32, #tpu.memory_space<vmem>>, vector<256x1xf32>
    %20 = vector.broadcast %19 : vector<256x1xf32> to vector<256x256xf32>
    %21 = arith.addf %18, %20 : vector<256x256xf32>
    %22 = math.tanh %21 : vector<256x256xf32>
    %c0_9 = arith.constant 0 : index
    %c0_10 = arith.constant 0 : index
    %23 = vector.load %arg6[%c0_9, %c0_10] : memref<256x1xf32, #tpu.memory_space<vmem>>, vector<256x1xf32>
    %24 = vector.broadcast %23 : vector<256x1xf32> to vector<256x256xf32>
    %25 = arith.mulf %22, %24 : vector<256x256xf32>
    %cst_11 = arith.constant dense<0.000000e+00> : vector<256xf32>
    %26 = vector.multi_reduction <add>, %25, %cst_11 [0] : vector<256x256xf32> to vector<256xf32>
    %27 = vector.shape_cast %26 : vector<256xf32> to vector<1x256xf32>
    %c0_12 = arith.constant 0 : index
    %c0_13 = arith.constant 0 : index
    %28 = vector.load %arg7[%c0_12, %c0_13] : memref<1x256xf32, #tpu.memory_space<vmem>>, vector<1x256xf32>
    tpu.vector_store %arg7[%c0_12, %c0_13], %27 {strides = array<i32>} : memref<1x256xf32, #tpu.memory_space<vmem>>, vector<1x256xf32>,
    return
  }
  func.func @transform_0(%arg0: i32) -> (i32, i32) {
    %c0_i32 = arith.constant 0 : i32
    %c0_i32_0 = arith.constant 0 : i32
    return %c0_i32, %arg0 : i32, i32
  }
  func.func @transform_1(%arg0: i32) -> (i32, i32) {
    %c0_i32 = arith.constant 0 : i32
    %c0_i32_0 = arith.constant 0 : i32
    %c0_i32_1 = arith.constant 0 : i32
    return %c0_i32, %c0_i32_0 : i32, i32
  }
  func.func @transform_2(%arg0: i32) -> (i32, i32) {
    %c0_i32 = arith.constant 0 : i32
    %c0_i32_0 = arith.constant 0 : i32
    %c0_i32_1 = arith.constant 0 : i32
    return %c0_i32, %c0_i32_0 : i32, i32
  }
  func.func @transform_3(%arg0: i32) -> (i32, i32) {
    %c0_i32 = arith.constant 0 : i32
    %c0_i32_0 = arith.constant 0 : i32
    %c0_i32_1 = arith.constant 0 : i32
    return %c0_i32, %c0_i32_0 : i32, i32
  }
  func.func @transform_4(%arg0: i32) -> (i32, i32) {
    %c0_i32 = arith.constant 0 : i32
    %c0_i32_0 = arith.constant 0 : i32
    %c0_i32_1 = arith.constant 0 : i32
    return %c0_i32, %c0_i32_0 : i32, i32
  }
  func.func @transform_5(%arg0: i32) -> (i32, i32) {
    %c0_i32 = arith.constant 0 : i32
    %c0_i32_0 = arith.constant 0 : i32
    %c0_i32_1 = arith.constant 0 : i32
    return %c0_i32, %c0_i32_0 : i32, i32
  }
  func.func @transform_6(%arg0: i32) -> (i32, i32) {
    %c0_i32 = arith.constant 0 : i32
    %c0_i32_0 = arith.constant 0 : i32
    return %c0_i32, %arg0 : i32, i32
  }
}

</mosaic_0001>

<llo_original>
// kernel: tpu_custom_call.1
$region0: #{tpu_custom_call.1}
  #allocation0 [shape = 'u32[]', space=smem, size = 0x4, offset = 0x4, fixed_abs, tag = 'smem constant byte address 0x4 - core index']
  #allocation1 [shape = 'u32[144,128]{1,0:T(1,128)}', space=vmem, size = 0x12000, scoped, tag = 'internal scratch']
  %s0 = inlined_call_operand.vmem [shape: f32[2,512], index: 0, kind: input, shape index: {}]
  %s1 = inlined_call_operand.vmem [shape: f32[256,2], index: 1, kind: input, shape index: {}]
  %s2 = inlined_call_operand.vmem [shape: f32[256,1], index: 2, kind: input, shape index: {}]
  %s3 = inlined_call_operand.vmem [shape: f32[256,256], index: 3, kind: input, shape index: {}]
  %s4 = inlined_call_operand.vmem [shape: f32[256,1], index: 4, kind: input, shape index: {}]
  %s5 = inlined_call_operand.vmem [shape: f32[256,1], index: 5, kind: input, shape index: {}]
  %s6 = inlined_call_operand.hbm [shape: f32[1,512], index: 6, kind: output, shape index: {}]
  %s7 = sld [smem:[#allocation0]]
  $region57: #{tpu_custom_call.1} parent=0
    _
  %s9 = ssub.s32 1, %s7
  %s10 = scalar_select 0, %s9, %s7
  $region1: #{tpu_custom_call.1} parent=0
    #allocation2 [shape = 'u8[2048]{0}', space=vmem, size = 0x800, scoped, tag = 'output window, operand 0']
    #allocation3 [shape = 's32[2]{0}', space=sflag, size = 0x8, scoped, tag = 'scoped memory for tpu_custom_call.1']
    %11 = vsyncpa [#allocation3], 0
    %s12 = scalar_lea.sflag [#allocation3], 1
    %13 = vsyncpa %s12, 0
    loop: start=0, step=1, limit=4
    $region2: #{tpu_custom_call.1} parent=1 // loop_pre_header
      _
    $region3: #{tpu_custom_call.1} parent=1 // loop_header
      %s15 = sphi 0, %s19
      %p16 = scmp.ge.s32.totalorder %s15, 4
      %s25 = sphi 0, %s27
      %s28 = sphi 0, %s25
      %s29 = sphi 0, %s28
      %s45 = sphi 0, %s29
      %s49 = sphi 0, %s49
      %s51 = sphi 0, %s49
      %s52 = sphi 0, %s51
      %s66 = sphi 0, %s52
      %s70 = sphi 0, %s70
      %s72 = sphi 0, %s70
      %s73 = sphi 0, %s72
      %s87 = sphi 0, %s73
      %s91 = sphi 0, %s91
      %s93 = sphi 0, %s91
      %s94 = sphi 0, %s93
      %s108 = sphi 0, %s94
      %s112 = sphi 0, %s112
      %s114 = sphi 0, %s112
      %s115 = sphi 0, %s114
      %s129 = sphi 0, %s115
      %s133 = sphi 0, %s133
      %s135 = sphi 0, %s133
      %s136 = sphi 0, %s135
      %s150 = sphi 0, %s136
      %s156 = sphi 0, %s158
      %s159 = sphi 0, %s156
      %s160 = sphi 0, %s159
      %s176 = sphi 0, %s160
    $region4: #{tpu_custom_call.1} parent=1 // loop_header_branch
      %18 = sbr.rel (%p16) target = $region8
    $region5: #{tpu_custom_call.1} parent=1 // loop_body
      %s20 = ssub.s32 %s15, 1
      %s21 = ssub.s32 %s15, 2
      %s22 = sadd.s32 %s15, 1
      %s23 = ssub.s32 %s15, %s22
      %p24 = scmp.eq.s32.totalorder %s23, 0
      %s26 = sadd.s32 %s25, 1
      %s27 = scalar_select %p24, %s25, %s26
      %p30 = pneg %p24
      %p31 = scmp.eq.s32.totalorder %s15, 1
      %p32 = por %p30, %p31
      %p33 = scmp.ne.s32.totalorder %s25, %s28
      %p34 = scmp.eq.s32.totalorder %s15, 0
      %p35 = por %p33, %p34
      %p36 = scmp.ne.s32.totalorder %s25, %s28
      %p37 = scmp.eq.s32.totalorder %s20, 1
      %p38 = por %p36, %p37
      %p39 = scmp.ne.s32.totalorder %s28, %s29
      %p40 = scmp.eq.s32.totalorder %s20, 0
      %p41 = por %p39, %p40
      %p42 = scmp.ne.s32.totalorder %s28, %s29
      %p43 = scmp.eq.s32.totalorder %s21, 1
      %p44 = por %p42, %p43
      %p46 = scmp.ne.s32.totalorder %s29, %s45
      %p47 = scmp.eq.s32.totalorder %s21, 0
      %p48 = por %p46, %p47
      %s50 = sadd.s32 %s49, 1
      %p53 = scmp.eq.s32.totalorder %s15, 1
      %p54 = scmp.ne.s32.totalorder %s49, %s51
      %p55 = scmp.eq.s32.totalorder %s15, 0
      %p56 = por %p54, %p55
      %p57 = scmp.ne.s32.totalorder %s49, %s51
      %p58 = scmp.eq.s32.totalorder %s20, 1
      %p59 = por %p57, %p58
      %p60 = scmp.ne.s32.totalorder %s51, %s52
      %p61 = scmp.eq.s32.totalorder %s20, 0
      %p62 = por %p60, %p61
      %p63 = scmp.ne.s32.totalorder %s51, %s52
      %p64 = scmp.eq.s32.totalorder %s21, 1
      %p65 = por %p63, %p64
      %p67 = scmp.ne.s32.totalorder %s52, %s66
      %p68 = scmp.eq.s32.totalorder %s21, 0
      %p69 = por %p67, %p68
      %s71 = sadd.s32 %s70, 1
      %p74 = scmp.eq.s32.totalorder %s15, 1
      %p75 = scmp.ne.s32.totalorder %s70, %s72
      %p76 = scmp.eq.s32.totalorder %s15, 0
      %p77 = por %p75, %p76
      %p78 = scmp.ne.s32.totalorder %s70, %s72
      %p79 = scmp.eq.s32.totalorder %s20, 1
      %p80 = por %p78, %p79
      %p81 = scmp.ne.s32.totalorder %s72, %s73
      %p82 = scmp.eq.s32.totalorder %s20, 0
      %p83 = por %p81, %p82
      %p84 = scmp.ne.s32.totalorder %s72, %s73
      %p85 = scmp.eq.s32.totalorder %s21, 1
      %p86 = por %p84, %p85
      %p88 = scmp.ne.s32.totalorder %s73, %s87
      %p89 = scmp.eq.s32.totalorder %s21, 0
      %p90 = por %p88, %p89
      %s92 = sadd.s32 %s91, 1
      %p95 = scmp.eq.s32.totalorder %s15, 1
      %p96 = scmp.ne.s32.totalorder %s91, %s93
      %p97 = scmp.eq.s32.totalorder %s15, 0
      %p98 = por %p96, %p97
      %p99 = scmp.ne.s32.totalorder %s91, %s93
      %p100 = scmp.eq.s32.totalorder %s20, 1
      %p101 = por %p99, %p100
      %p102 = scmp.ne.s32.totalorder %s93, %s94
      %p103 = scmp.eq.s32.totalorder %s20, 0
      %p104 = por %p102, %p103
      %p105 = scmp.ne.s32.totalorder %s93, %s94
      %p106 = scmp.eq.s32.totalorder %s21, 1
      %p107 = por %p105, %p106
      %p109 = scmp.ne.s32.totalorder %s94, %s108
      %p110 = scmp.eq.s32.totalorder %s21, 0
      %p111 = por %p109, %p110
      %s113 = sadd.s32 %s112, 1
      %p116 = scmp.eq.s32.totalorder %s15, 1
      %p117 = scmp.ne.s32.totalorder %s112, %s114
      %p118 = scmp.eq.s32.totalorder %s15, 0
      %p119 = por %p117, %p118
      %p120 = scmp.ne.s32.totalorder %s112, %s114
      %p121 = scmp.eq.s32.totalorder %s20, 1
      %p122 = por %p120, %p121
      %p123 = scmp.ne.s32.totalorder %s114, %s115
      %p124 = scmp.eq.s32.totalorder %s20, 0
      %p125 = por %p123, %p124
      %p126 = scmp.ne.s32.totalorder %s114, %s115
      %p127 = scmp.eq.s32.totalorder %s21, 1
      %p128 = por %p126, %p127
      %p130 = scmp.ne.s32.totalorder %s115, %s129
      %p131 = scmp.eq.s32.totalorder %s21, 0
      %p132 = por %p130, %p131
      %s134 = sadd.s32 %s133, 1
      %p137 = scmp.eq.s32.totalorder %s15, 1
      %p138 = scmp.ne.s32.totalorder %s133, %s135
      %p139 = scmp.eq.s32.totalorder %s15, 0
      %p140 = por %p138, %p139
      %p141 = scmp.ne.s32.totalorder %s133, %s135
      %p142 = scmp.eq.s32.totalorder %s20, 1
      %p143 = por %p141, %p142
      %p144 = scmp.ne.s32.totalorder %s135, %s136
      %p145 = scmp.eq.s32.totalorder %s20, 0
      %p146 = por %p144, %p145
      %p147 = scmp.ne.s32.totalorder %s135, %s136
      %p148 = scmp.eq.s32.totalorder %s21, 1
      %p149 = por %p147, %p148
      %p151 = scmp.ne.s32.totalorder %s136, %s150
      %p152 = scmp.eq.s32.totalorder %s21, 0
      %p153 = por %p151, %p152
      %s154 = ssub.s32 %s15, %s22
      %p155 = scmp.eq.s32.totalorder %s154, 0
      %s157 = sadd.s32 %s156, 1
      %s158 = scalar_select %p155, %s156, %s157
      %p161 = pneg %p155
      %p162 = scmp.eq.s32.totalorder %s15, 1
      %p163 = por %p161, %p162
      %p164 = scmp.ne.s32.totalorder %s156, %s159
      %p165 = scmp.eq.s32.totalorder %s15, 0
      %p166 = por %p164, %p165
      %p167 = scmp.ne.s32.totalorder %s156, %s159
      %p168 = scmp.eq.s32.totalorder %s20, 1
      %p169 = por %p167, %p168
      %p170 = scmp.ne.s32.totalorder %s159, %s160
      %p171 = scmp.eq.s32.totalorder %s20, 0
      %p172 = por %p170, %p171
      %p173 = scmp.ne.s32.totalorder %s159, %s160
      %p174 = scmp.eq.s32.totalorder %s21, 1
      %p175 = por %p173, %p174
      %p177 = scmp.ne.s32.totalorder %s160, %s176
      %p178 = scmp.eq.s32.totalorder %s21, 0
      %p179 = por %p177, %p178
      %p180 = scmp.le.s32.totalorder 1, %s15
      %p181 = scmp.lt.s32.totalorder %s15, 3
      %p182 = pnand %p180, %p181
      %p183 = pneg %p182
      // Predicated region
      $region9: #{tpu_custom_call.1} parent=5 // pred_check
        _
      $region10: #{tpu_custom_call.1} parent=5 // pred_check_branch
        %185 = sbr.rel (%p182) target = $region12
      $region11: #{tpu_custom_call.1} parent=5 // pred_region
        %s186 = ssub.s32 %s15, 1
        // Predicated region
        $region13: #{tpu_custom_call.1} parent=11 // pred_check
          %p187 = pneg %p62
        $region14: #{tpu_custom_call.1} parent=11 // pred_check_branch
          %189 = sbr.rel (%p187) target = $region16
        $region15: #{tpu_custom_call.1} parent=11 // pred_region
          _
        $region16: #{tpu_custom_call.1} parent=11 // pred_fallthru
          _
        // Predicated region
        $region17: #{tpu_custom_call.1} parent=11 // pred_check
          %p190 = pneg %p83
        $region18: #{tpu_custom_call.1} parent=11 // pred_check_branch
          %192 = sbr.rel (%p190) target = $region20
        $region19: #{tpu_custom_call.1} parent=11 // pred_region
          _
        $region20: #{tpu_custom_call.1} parent=11 // pred_fallthru
          _
        // Predicated region
        $region21: #{tpu_custom_call.1} parent=11 // pred_check
          %p193 = pneg %p104
        $region22: #{tpu_custom_call.1} parent=11 // pred_check_branch
          %195 = sbr.rel (%p193) target = $region24
        $region23: #{tpu_custom_call.1} parent=11 // pred_region
          _
        $region24: #{tpu_custom_call.1} parent=11 // pred_fallthru
          _
        // Predicated region
        $region25: #{tpu_custom_call.1} parent=11 // pred_check
          %p196 = pneg %p125
        $region26: #{tpu_custom_call.1} parent=11 // pred_check_branch
          %198 = sbr.rel (%p196) target = $region28
        $region27: #{tpu_custom_call.1} parent=11 // pred_region
          _
        $region28: #{tpu_custom_call.1} parent=11 // pred_fallthru
          _
        // Predicated region
        $region29: #{tpu_custom_call.1} parent=11 // pred_check
          %p199 = pneg %p146
        $region30: #{tpu_custom_call.1} parent=11 // pred_check_branch
          %201 = sbr.rel (%p199) target = $region32
        $region31: #{tpu_custom_call.1} parent=11 // pred_region
          _
        $region32: #{tpu_custom_call.1} parent=11 // pred_fallthru
          _
      $region12: #{tpu_custom_call.1} parent=5 // pred_fallthru
        _
      %p202 = scmp.lt.s32.totalorder %s15, 2
      // Predicated region
      $region33: #{tpu_custom_call.1} parent=5 // pred_check
        %p203 = pneg %p202
      $region34: #{tpu_custom_call.1} parent=5 // pred_check_branch
        %205 = sbr.rel (%p203) target = $region36
      $region35: #{tpu_custom_call.1} parent=5 // pred_region
        // Predicated region
        $region37: #{tpu_custom_call.1} parent=35 // pred_check
          %p206 = pneg %p35
        $region38: #{tpu_custom_call.1} parent=35 // pred_check_branch
          %208 = sbr.rel (%p206) target = $region40
        $region39: #{tpu_custom_call.1} parent=35 // pred_region
          %s209 = smul.u32 2, %s15
          %p210 = scmp.lt.s32.totalorder %s209, 3
          %s211 = scalar_select %p210, %s209, 3
          %s212 = smul.addr %s211, 2
          %s213 = scalar_lea.vmem %s0, %s212
          %s214 = smul.u32 2, %s15
        $region40: #{tpu_custom_call.1} parent=35 // pred_fallthru
          _
      $region36: #{tpu_custom_call.1} parent=5 // pred_fallthru
        _
      %p215 = scmp.le.s32.totalorder 1, %s15
      %p216 = scmp.lt.s32.totalorder %s15, 3
      %p217 = pnand %p215, %p216
      %p218 = pneg %p217
      // Predicated region
      $region41: #{tpu_custom_call.1} parent=5 // pred_check
        _
      $region42: #{tpu_custom_call.1} parent=5 // pred_check_branch
        %220 = sbr.rel (%p217) target = $region44
      $region43: #{tpu_custom_call.1} parent=5 // pred_region
        %s221 = ssub.s32 %s15, 1
        %s222 = smul.u32 2, %s20
        %p223 = scmp.lt.s32.totalorder %s222, 3
        %s224 = scalar_select %p223, %s222, 3
        %s225 = smul.addr %s224, 2
        %s226 = scalar_lea.vmem %s0, %s225
        %p227 = pneg %p41
        %p228 = pneg %p38
        %p229 = pneg %p62
        %p230 = pneg %p59
        %p231 = pneg %p83
        %p232 = pneg %p80
        %p233 = pneg %p104
        %p234 = pneg %p101
        %p235 = pneg %p125
        %p236 = pneg %p122
        %p237 = pneg %p146
        %p238 = pneg %p143
        %p239 = pneg %p172
        %p240 = pneg %p169
        %s241 = sand.u32 %s159, 1
        %s242 = scalar_lea.sflag [#allocation3], %s241
        %s243 = sand.u32 %s159, 1
        %s244 = smul.addr %s243, 2
        %s245 = scalar_lea.vmem [#allocation2], %s244
        %s246 = smul.u32 2, %s20
        %p247 = scmp.lt.s32.totalorder %s246, 3
        %s248 = scalar_select %p247, %s246, 3
        %s249 = smul.addr %s248, 2
        %s250 = scalar_lea.vmem %s0, %s249
        %s251 = smul.u32 2, %s20
        %s252 = smul.u32 2, %s20
        %v253 = vld [vmem:[%s250] sm:$0xf]
        %v254 = vld [vmem:[%s1] sm:$0xff]
        %v255 = vld [vmem:[%s1 + $0x8] sm:$0xff]
        %v256 = vld [vmem:[%s1 + $0x10] sm:$0xff]
        %v257 = vld [vmem:[%s1 + $0x18] sm:$0xff]
        %v258 = vld [vmem:[%s1 + $0x20] sm:$0xff]
        %v259 = vld [vmem:[%s1 + $0x28] sm:$0xff]
        %v260 = vld [vmem:[%s1 + $0x30] sm:$0xff]
        %v261 = vld [vmem:[%s1 + $0x38] sm:$0xff]
        %v262 = vld [vmem:[%s1 + $0x40] sm:$0xff]
        %v263 = vld [vmem:[%s1 + $0x48] sm:$0xff]
        %v264 = vld [vmem:[%s1 + $0x50] sm:$0xff]
        %v265 = vld [vmem:[%s1 + $0x58] sm:$0xff]
        %v266 = vld [vmem:[%s1 + $0x60] sm:$0xff]
        %v267 = vld [vmem:[%s1 + $0x68] sm:$0xff]
        %v268 = vld [vmem:[%s1 + $0x70] sm:$0xff]
        %v269 = vld [vmem:[%s1 + $0x78] sm:$0xff]
        %v270 = vld [vmem:[%s1 + $0x80] sm:$0xff]
        %v271 = vld [vmem:[%s1 + $0x88] sm:$0xff]
        %v272 = vld [vmem:[%s1 + $0x90] sm:$0xff]
        %v273 = vld [vmem:[%s1 + $0x98] sm:$0xff]
        %v274 = vld [vmem:[%s1 + $0xa0] sm:$0xff]
        %v275 = vld [vmem:[%s1 + $0xa8] sm:$0xff]
        %v276 = vld [vmem:[%s1 + $0xb0] sm:$0xff]
        %v277 = vld [vmem:[%s1 + $0xb8] sm:$0xff]
        %v278 = vld [vmem:[%s1 + $0xc0] sm:$0xff]
        %v279 = vld [vmem:[%s1 + $0xc8] sm:$0xff]
        %v280 = vld [vmem:[%s1 + $0xd0] sm:$0xff]
        %v281 = vld [vmem:[%s1 + $0xd8] sm:$0xff]
        %v282 = vld [vmem:[%s1 + $0xe0] sm:$0xff]
        %v283 = vld [vmem:[%s1 + $0xe8] sm:$0xff]
        %v284 = vld [vmem:[%s1 + $0xf0] sm:$0xff]
        %v285 = vld [vmem:[%s1 + $0xf8] sm:$0xff]
        %287 = vset.pattern.permute.xlu0 0
        %288 = vperm.xlu0 %287, %v254
        %v289 = vpop.permute.xlu0 %288
        %292 = vset.pattern.permute.xlu0 0
        %293 = vperm.xlu0 %292, %v255
        %v294 = vpop.permute.xlu0 %293
        %297 = vset.pattern.permute.xlu0 0
        %298 = vperm.xlu0 %297, %v256
        %v299 = vpop.permute.xlu0 %298
        %302 = vset.pattern.permute.xlu0 0
        %303 = vperm.xlu0 %302, %v257
        %v304 = vpop.permute.xlu0 %303
        %307 = vset.pattern.permute.xlu0 0
        %308 = vperm.xlu0 %307, %v258
        %v309 = vpop.permute.xlu0 %308
        %312 = vset.pattern.permute.xlu0 0
        %313 = vperm.xlu0 %312, %v259
        %v314 = vpop.permute.xlu0 %313
        %317 = vset.pattern.permute.xlu0 0
        %318 = vperm.xlu0 %317, %v260
        %v319 = vpop.permute.xlu0 %318
        %322 = vset.pattern.permute.xlu0 0
        %323 = vperm.xlu0 %322, %v261
        %v324 = vpop.permute.xlu0 %323
        %327 = vset.pattern.permute.xlu0 0
        %328 = vperm.xlu0 %327, %v262
        %v329 = vpop.permute.xlu0 %328
        %332 = vset.pattern.permute.xlu0 0
        %333 = vperm.xlu0 %332, %v263
        %v334 = vpop.permute.xlu0 %333
        %337 = vset.pattern.permute.xlu0 0
        %338 = vperm.xlu0 %337, %v264
        %v339 = vpop.permute.xlu0 %338
        %342 = vset.pattern.permute.xlu0 0
        %343 = vperm.xlu0 %342, %v265
        %v344 = vpop.permute.xlu0 %343
        %347 = vset.pattern.permute.xlu0 0
        %348 = vperm.xlu0 %347, %v266
        %v349 = vpop.permute.xlu0 %348
        %352 = vset.pattern.permute.xlu0 0
        %353 = vperm.xlu0 %352, %v267
        %v354 = vpop.permute.xlu0 %353
        %357 = vset.pattern.permute.xlu0 0
        %358 = vperm.xlu0 %357, %v268
        %v359 = vpop.permute.xlu0 %358
        %362 = vset.pattern.permute.xlu0 0
        %363 = vperm.xlu0 %362, %v269
        %v364 = vpop.permute.xlu0 %363
        %367 = vset.pattern.permute.xlu0 0
        %368 = vperm.xlu0 %367, %v270
        %v369 = vpop.permute.xlu0 %368
        %372 = vset.pattern.permute.xlu0 0
        %373 = vperm.xlu0 %372, %v271
        %v374 = vpop.permute.xlu0 %373
        %377 = vset.pattern.permute.xlu0 0
        %378 = vperm.xlu0 %377, %v272
        %v379 = vpop.permute.xlu0 %378
        %382 = vset.pattern.permute.xlu0 0
        %383 = vperm.xlu0 %382, %v273
        %v384 = vpop.permute.xlu0 %383
        %387 = vset.pattern.permute.xlu0 0
        %388 = vperm.xlu0 %387, %v274
        %v389 = vpop.permute.xlu0 %388
        %392 = vset.pattern.permute.xlu0 0
        %393 = vperm.xlu0 %392, %v275
        %v394 = vpop.permute.xlu0 %393
        %397 = vset.pattern.permute.xlu0 0
        %398 = vperm.xlu0 %397, %v276
        %v399 = vpop.permute.xlu0 %398
        %402 = vset.pattern.permute.xlu0 0
        %403 = vperm.xlu0 %402, %v277
        %v404 = vpop.permute.xlu0 %403
        %407 = vset.pattern.permute.xlu0 0
        %408 = vperm.xlu0 %407, %v278
        %v409 = vpop.permute.xlu0 %408
        %412 = vset.pattern.permute.xlu0 0
        %413 = vperm.xlu0 %412, %v279
        %v414 = vpop.permute.xlu0 %413
        %417 = vset.pattern.permute.xlu0 0
        %418 = vperm.xlu0 %417, %v280
        %v419 = vpop.permute.xlu0 %418
        %422 = vset.pattern.permute.xlu0 0
        %423 = vperm.xlu0 %422, %v281
        %v424 = vpop.permute.xlu0 %423
        %427 = vset.pattern.permute.xlu0 0
        %428 = vperm.xlu0 %427, %v282
        %v429 = vpop.permute.xlu0 %428
        %432 = vset.pattern.permute.xlu0 0
        %433 = vperm.xlu0 %432, %v283
        %v434 = vpop.permute.xlu0 %433
        %437 = vset.pattern.permute.xlu0 0
        %438 = vperm.xlu0 %437, %v284
        %v439 = vpop.permute.xlu0 %438
        %442 = vset.pattern.permute.xlu0 0
        %443 = vperm.xlu0 %442, %v285
        %v444 = vpop.permute.xlu0 %443
        %v447 = vlaneseq
        %v448 = vshrl.u32 %v447, 7
        %v449 = vsub.s32 0, %v448
        %v450 = vrot.slane %v253, %v449
        %v451 = vlaneseq
        %v452 = vshrl.u32 %v451, 7
        %v453 = vsub.s32 2, %v452
        %v454 = vrot.slane %v253, %v453
        %v457 = vlaneseq
        %v458 = vshrl.u32 %v457, 7
        %v459 = vsub.s32 0, %v458
        %v460 = vrot.slane %v450, %v459
        %v461 = vlaneseq
        %v462 = vshrl.u32 %v461, 7
        %v463 = vsub.s32 0, %v462
        %v464 = vrot.slane %v454, %v463
        %v465 = vmul.f32 %v289, %v460
        %v466 = vmul.f32 %v289, %v464
        %v467 = vmul.f32 %v294, %v460
        %v468 = vmul.f32 %v294, %v464
        %v469 = vmul.f32 %v299, %v460
        %v470 = vmul.f32 %v299, %v464
        %v471 = vmul.f32 %v304, %v460
        %v472 = vmul.f32 %v304, %v464
        %v473 = vmul.f32 %v309, %v460
        %v474 = vmul.f32 %v309, %v464
        %v475 = vmul.f32 %v314, %v460
        %v476 = vmul.f32 %v314, %v464
        %v477 = vmul.f32 %v319, %v460
        %v478 = vmul.f32 %v319, %v464
        %v479 = vmul.f32 %v324, %v460
        %v480 = vmul.f32 %v324, %v464
        %v481 = vmul.f32 %v329, %v460
        %v482 = vmul.f32 %v329, %v464
        %v483 = vmul.f32 %v334, %v460
        %v484 = vmul.f32 %v334, %v464
        %v485 = vmul.f32 %v339, %v460
        %v486 = vmul.f32 %v339, %v464
        %v487 = vmul.f32 %v344, %v460
        %v488 = vmul.f32 %v344, %v464
        %v489 = vmul.f32 %v349, %v460
        %v490 = vmul.f32 %v349, %v464
        %v491 = vmul.f32 %v354, %v460
        %v492 = vmul.f32 %v354, %v464
        %v493 = vmul.f32 %v359, %v460
        %v494 = vmul.f32 %v359, %v464
        %v495 = vmul.f32 %v364, %v460
        %v496 = vmul.f32 %v364, %v464
        %v497 = vmul.f32 %v369, %v460
        %v498 = vmul.f32 %v369, %v464
        %v499 = vmul.f32 %v374, %v460
        %v500 = vmul.f32 %v374, %v464
        %v501 = vmul.f32 %v379, %v460
        %v502 = vmul.f32 %v379, %v464
        %v503 = vmul.f32 %v384, %v460
        %v504 = vmul.f32 %v384, %v464
        %v505 = vmul.f32 %v389, %v460
        %v506 = vmul.f32 %v389, %v464
        %v507 = vmul.f32 %v394, %v460
        %v508 = vmul.f32 %v394, %v464
        %v509 = vmul.f32 %v399, %v460
        %v510 = vmul.f32 %v399, %v464
        %v511 = vmul.f32 %v404, %v460
        %v512 = vmul.f32 %v404, %v464
        %v513 = vmul.f32 %v409, %v460
        %v514 = vmul.f32 %v409, %v464
        %v515 = vmul.f32 %v414, %v460
        %v516 = vmul.f32 %v414, %v464
        %v517 = vmul.f32 %v419, %v460
        %v518 = vmul.f32 %v419, %v464
        %v519 = vmul.f32 %v424, %v460
        %v520 = vmul.f32 %v424, %v464
        %v521 = vmul.f32 %v429, %v460
        %v522 = vmul.f32 %v429, %v464
        %v523 = vmul.f32 %v434, %v460
        %v524 = vmul.f32 %v434, %v464
        %v525 = vmul.f32 %v439, %v460
        %v526 = vmul.f32 %v439, %v464
        %v527 = vmul.f32 %v444, %v460
        %v528 = vmul.f32 %v444, %v464
        %529 = vset.pattern.permute.xlu0 1
        %530 = vperm.xlu0 %529, %v254
        %v531 = vpop.permute.xlu0 %530
        %533 = vset.pattern.permute.xlu0 1
        %534 = vperm.xlu0 %533, %v255
        %v535 = vpop.permute.xlu0 %534
        %537 = vset.pattern.permute.xlu0 1
        %538 = vperm.xlu0 %537, %v256
        %v539 = vpop.permute.xlu0 %538
        %541 = vset.pattern.permute.xlu0 1
        %542 = vperm.xlu0 %541, %v257
        %v543 = vpop.permute.xlu0 %542
        %545 = vset.pattern.permute.xlu0 1
        %546 = vperm.xlu0 %545, %v258
        %v547 = vpop.permute.xlu0 %546
        %549 = vset.pattern.permute.xlu0 1
        %550 = vperm.xlu0 %549, %v259
        %v551 = vpop.permute.xlu0 %550
        %553 = vset.pattern.permute.xlu0 1
        %554 = vperm.xlu0 %553, %v260
        %v555 = vpop.permute.xlu0 %554
        %557 = vset.pattern.permute.xlu0 1
        %558 = vperm.xlu0 %557, %v261
        %v559 = vpop.permute.xlu0 %558
        %561 = vset.pattern.permute.xlu0 1
        %562 = vperm.xlu0 %561, %v262
        %v563 = vpop.permute.xlu0 %562
        %565 = vset.pattern.permute.xlu0 1
        %566 = vperm.xlu0 %565, %v263
        %v567 = vpop.permute.xlu0 %566
        %569 = vset.pattern.permute.xlu0 1
        %570 = vperm.xlu0 %569, %v264
        %v571 = vpop.permute.xlu0 %570
        %573 = vset.pattern.permute.xlu0 1
        %574 = vperm.xlu0 %573, %v265
        %v575 = vpop.permute.xlu0 %574
        %577 = vset.pattern.permute.xlu0 1
        %578 = vperm.xlu0 %577, %v266
        %v579 = vpop.permute.xlu0 %578
        %581 = vset.pattern.permute.xlu0 1
        %582 = vperm.xlu0 %581, %v267
        %v583 = vpop.permute.xlu0 %582
        %585 = vset.pattern.permute.xlu0 1
        %586 = vperm.xlu0 %585, %v268
        %v587 = vpop.permute.xlu0 %586
        %589 = vset.pattern.permute.xlu0 1
        %590 = vperm.xlu0 %589, %v269
        %v591 = vpop.permute.xlu0 %590
        %593 = vset.pattern.permute.xlu0 1
        %594 = vperm.xlu0 %593, %v270
        %v595 = vpop.permute.xlu0 %594
        %597 = vset.pattern.permute.xlu0 1
        %598 = vperm.xlu0 %597, %v271
        %v599 = vpop.permute.xlu0 %598
        %601 = vset.pattern.permute.xlu0 1
        %602 = vperm.xlu0 %601, %v272
        %v603 = vpop.permute.xlu0 %602
        %605 = vset.pattern.permute.xlu0 1
        %606 = vperm.xlu0 %605, %v273
        %v607 = vpop.permute.xlu0 %606
        %609 = vset.pattern.permute.xlu0 1
        %610 = vperm.xlu0 %609, %v274
        %v611 = vpop.permute.xlu0 %610
        %613 = vset.pattern.permute.xlu0 1
        %614 = vperm.xlu0 %613, %v275
        %v615 = vpop.permute.xlu0 %614
        %617 = vset.pattern.permute.xlu0 1
        %618 = vperm.xlu0 %617, %v276
        %v619 = vpop.permute.xlu0 %618
        %621 = vset.pattern.permute.xlu0 1
        %622 = vperm.xlu0 %621, %v277
        %v623 = vpop.permute.xlu0 %622
        %625 = vset.pattern.permute.xlu0 1
        %626 = vperm.xlu0 %625, %v278
        %v627 = vpop.permute.xlu0 %626
        %629 = vset.pattern.permute.xlu0 1
        %630 = vperm.xlu0 %629, %v279
        %v631 = vpop.permute.xlu0 %630
        %633 = vset.pattern.permute.xlu0 1
        %634 = vperm.xlu0 %633, %v280
        %v635 = vpop.permute.xlu0 %634
        %637 = vset.pattern.permute.xlu0 1
        %638 = vperm.xlu0 %637, %v281
        %v639 = vpop.permute.xlu0 %638
        %641 = vset.pattern.permute.xlu0 1
        %642 = vperm.xlu0 %641, %v282
        %v643 = vpop.permute.xlu0 %642
        %645 = vset.pattern.permute.xlu0 1
        %646 = vperm.xlu0 %645, %v283
        %v647 = vpop.permute.xlu0 %646
        %649 = vset.pattern.permute.xlu0 1
        %650 = vperm.xlu0 %649, %v284
        %v651 = vpop.permute.xlu0 %650
        %653 = vset.pattern.permute.xlu0 1
        %654 = vperm.xlu0 %653, %v285
        %v655 = vpop.permute.xlu0 %654
        %v657 = vlaneseq
        %v658 = vshrl.u32 %v657, 7
        %v659 = vsub.s32 1, %v658
        %v660 = vrot.slane %v253, %v659
        %v661 = vlaneseq
        %v662 = vshrl.u32 %v661, 7
        %v663 = vsub.s32 3, %v662
        %v664 = vrot.slane %v253, %v663
        %v667 = vlaneseq
        %v668 = vshrl.u32 %v667, 7
        %v669 = vsub.s32 1, %v668
        %v670 = vrot.slane %v660, %v669
        %v671 = vlaneseq
        %v672 = vshrl.u32 %v671, 7
        %v673 = vsub.s32 1, %v672
        %v674 = vrot.slane %v664, %v673
        %v675 = vmul.f32 %v531, %v670
        %v676 = vmul.f32 %v531, %v674
        %v677 = vmul.f32 %v535, %v670
        %v678 = vmul.f32 %v535, %v674
        %v679 = vmul.f32 %v539, %v670
        %v680 = vmul.f32 %v539, %v674
        %v681 = vmul.f32 %v543, %v670
        %v682 = vmul.f32 %v543, %v674
        %v683 = vmul.f32 %v547, %v670
        %v684 = vmul.f32 %v547, %v674
        %v685 = vmul.f32 %v551, %v670
        %v686 = vmul.f32 %v551, %v674
        %v687 = vmul.f32 %v555, %v670
        %v688 = vmul.f32 %v555, %v674
        %v689 = vmul.f32 %v559, %v670
        %v690 = vmul.f32 %v559, %v674
        %v691 = vmul.f32 %v563, %v670
        %v692 = vmul.f32 %v563, %v674
        %v693 = vmul.f32 %v567, %v670
        %v694 = vmul.f32 %v567, %v674
        %v695 = vmul.f32 %v571, %v670
        %v696 = vmul.f32 %v571, %v674
        %v697 = vmul.f32 %v575, %v670
        %v698 = vmul.f32 %v575, %v674
        %v699 = vmul.f32 %v579, %v670
        %v700 = vmul.f32 %v579, %v674
        %v701 = vmul.f32 %v583, %v670
        %v702 = vmul.f32 %v583, %v674
        %v703 = vmul.f32 %v587, %v670
        %v704 = vmul.f32 %v587, %v674
        %v705 = vmul.f32 %v591, %v670
        %v706 = vmul.f32 %v591, %v674
        %v707 = vmul.f32 %v595, %v670
        %v708 = vmul.f32 %v595, %v674
        %v709 = vmul.f32 %v599, %v670
        %v710 = vmul.f32 %v599, %v674
        %v711 = vmul.f32 %v603, %v670
        %v712 = vmul.f32 %v603, %v674
        %v713 = vmul.f32 %v607, %v670
        %v714 = vmul.f32 %v607, %v674
        %v715 = vmul.f32 %v611, %v670
        %v716 = vmul.f32 %v611, %v674
        %v717 = vmul.f32 %v615, %v670
        %v718 = vmul.f32 %v615, %v674
        %v719 = vmul.f32 %v619, %v670
        %v720 = vmul.f32 %v619, %v674
        %v721 = vmul.f32 %v623, %v670
        %v722 = vmul.f32 %v623, %v674
        %v723 = vmul.f32 %v627, %v670
        %v724 = vmul.f32 %v627, %v674
        %v725 = vmul.f32 %v631, %v670
        %v726 = vmul.f32 %v631, %v674
        %v727 = vmul.f32 %v635, %v670
        %v728 = vmul.f32 %v635, %v674
        %v729 = vmul.f32 %v639, %v670
        %v730 = vmul.f32 %v639, %v674
        %v731 = vmul.f32 %v643, %v670
        %v732 = vmul.f32 %v643, %v674
        %v733 = vmul.f32 %v647, %v670
        %v734 = vmul.f32 %v647, %v674
        %v735 = vmul.f32 %v651, %v670
        %v736 = vmul.f32 %v651, %v674
        %v737 = vmul.f32 %v655, %v670
        %v738 = vmul.f32 %v655, %v674
        %v739 = vadd.f32 %v465, %v675
        %v740 = vadd.f32 %v466, %v676
        %v741 = vadd.f32 %v467, %v677
        %v742 = vadd.f32 %v468, %v678
        %v743 = vadd.f32 %v469, %v679
        %v744 = vadd.f32 %v470, %v680
        %v745 = vadd.f32 %v471, %v681
        %v746 = vadd.f32 %v472, %v682
        %v747 = vadd.f32 %v473, %v683
        %v748 = vadd.f32 %v474, %v684
        %v749 = vadd.f32 %v475, %v685
        %v750 = vadd.f32 %v476, %v686
        %v751 = vadd.f32 %v477, %v687
        %v752 = vadd.f32 %v478, %v688
        %v753 = vadd.f32 %v479, %v689
        %v754 = vadd.f32 %v480, %v690
        %v755 = vadd.f32 %v481, %v691
        %v756 = vadd.f32 %v482, %v692
        %v757 = vadd.f32 %v483, %v693
        %v758 = vadd.f32 %v484, %v694
        %v759 = vadd.f32 %v485, %v695
        %v760 = vadd.f32 %v486, %v696
        %v761 = vadd.f32 %v487, %v697
        %v762 = vadd.f32 %v488, %v698
        %v763 = vadd.f32 %v489, %v699
        %v764 = vadd.f32 %v490, %v700
        %v765 = vadd.f32 %v491, %v701
        %v766 = vadd.f32 %v492, %v702
        %v767 = vadd.f32 %v493, %v703
        %v768 = vadd.f32 %v494, %v704
        %v769 = vadd.f32 %v495, %v705
        %v770 = vadd.f32 %v496, %v706
        %v771 = vadd.f32 %v497, %v707
        %v772 = vadd.f32 %v498, %v708
        %v773 = vadd.f32 %v499, %v709
        %v774 = vadd.f32 %v500, %v710
        %v775 = vadd.f32 %v501, %v711
        %v776 = vadd.f32 %v502, %v712
        %v777 = vadd.f32 %v503, %v713
        %v778 = vadd.f32 %v504, %v714
        %v779 = vadd.f32 %v505, %v715
        %v780 = vadd.f32 %v506, %v716
        %v781 = vadd.f32 %v507, %v717
        %v782 = vadd.f32 %v508, %v718
        %v783 = vadd.f32 %v509, %v719
        %v784 = vadd.f32 %v510, %v720
        %v785 = vadd.f32 %v511, %v721
        %v786 = vadd.f32 %v512, %v722
        %v787 = vadd.f32 %v513, %v723
        %v788 = vadd.f32 %v514, %v724
        %v789 = vadd.f32 %v515, %v725
        %v790 = vadd.f32 %v516, %v726
        %v791 = vadd.f32 %v517, %v727
        %v792 = vadd.f32 %v518, %v728
        %v793 = vadd.f32 %v519, %v729
        %v794 = vadd.f32 %v520, %v730
        %v795 = vadd.f32 %v521, %v731
        %v796 = vadd.f32 %v522, %v732
        %v797 = vadd.f32 %v523, %v733
        %v798 = vadd.f32 %v524, %v734
        %v799 = vadd.f32 %v525, %v735
        %v800 = vadd.f32 %v526, %v736
        %v801 = vadd.f32 %v527, %v737
        %v802 = vadd.f32 %v528, %v738
        %v803 = vld [vmem:[%s2] sm:$0xff]
        %v804 = vld [vmem:[%s2 + $0x8] sm:$0xff]
        %v805 = vld [vmem:[%s2 + $0x10] sm:$0xff]
        %v806 = vld [vmem:[%s2 + $0x18] sm:$0xff]
        %v807 = vld [vmem:[%s2 + $0x20] sm:$0xff]
        %v808 = vld [vmem:[%s2 + $0x28] sm:$0xff]
        %v809 = vld [vmem:[%s2 + $0x30] sm:$0xff]
        %v810 = vld [vmem:[%s2 + $0x38] sm:$0xff]
        %v811 = vld [vmem:[%s2 + $0x40] sm:$0xff]
        %v812 = vld [vmem:[%s2 + $0x48] sm:$0xff]
        %v813 = vld [vmem:[%s2 + $0x50] sm:$0xff]
        %v814 = vld [vmem:[%s2 + $0x58] sm:$0xff]
        %v815 = vld [vmem:[%s2 + $0x60] sm:$0xff]
        %v816 = vld [vmem:[%s2 + $0x68] sm:$0xff]
        %v817 = vld [vmem:[%s2 + $0x70] sm:$0xff]
        %v818 = vld [vmem:[%s2 + $0x78] sm:$0xff]
        %v819 = vld [vmem:[%s2 + $0x80] sm:$0xff]
        %v820 = vld [vmem:[%s2 + $0x88] sm:$0xff]
        %v821 = vld [vmem:[%s2 + $0x90] sm:$0xff]
        %v822 = vld [vmem:[%s2 + $0x98] sm:$0xff]
        %v823 = vld [vmem:[%s2 + $0xa0] sm:$0xff]
        %v824 = vld [vmem:[%s2 + $0xa8] sm:$0xff]
        %v825 = vld [vmem:[%s2 + $0xb0] sm:$0xff]
        %v826 = vld [vmem:[%s2 + $0xb8] sm:$0xff]
        %v827 = vld [vmem:[%s2 + $0xc0] sm:$0xff]
        %v828 = vld [vmem:[%s2 + $0xc8] sm:$0xff]
        %v829 = vld [vmem:[%s2 + $0xd0] sm:$0xff]
        %v830 = vld [vmem:[%s2 + $0xd8] sm:$0xff]
        %v831 = vld [vmem:[%s2 + $0xe0] sm:$0xff]
        %v832 = vld [vmem:[%s2 + $0xe8] sm:$0xff]
        %v833 = vld [vmem:[%s2 + $0xf0] sm:$0xff]
        %v834 = vld [vmem:[%s2 + $0xf8] sm:$0xff]
        %836 = vset.pattern.permute.xlu0 0
        %837 = vperm.xlu0 %836, %v803
        %v838 = vpop.permute.xlu0 %837
        %841 = vset.pattern.permute.xlu0 0
        %842 = vperm.xlu0 %841, %v804
        %v843 = vpop.permute.xlu0 %842
        %846 = vset.pattern.permute.xlu0 0
        %847 = vperm.xlu0 %846, %v805
        %v848 = vpop.permute.xlu0 %847
        %851 = vset.pattern.permute.xlu0 0
        %852 = vperm.xlu0 %851, %v806
        %v853 = vpop.permute.xlu0 %852
        %856 = vset.pattern.permute.xlu0 0
        %857 = vperm.xlu0 %856, %v807
        %v858 = vpop.permute.xlu0 %857
        %861 = vset.pattern.permute.xlu0 0
        %862 = vperm.xlu0 %861, %v808
        %v863 = vpop.permute.xlu0 %862
        %866 = vset.pattern.permute.xlu0 0
        %867 = vperm.xlu0 %866, %v809
        %v868 = vpop.permute.xlu0 %867
        %871 = vset.pattern.permute.xlu0 0
        %872 = vperm.xlu0 %871, %v810
        %v873 = vpop.permute.xlu0 %872
        %876 = vset.pattern.permute.xlu0 0
        %877 = vperm.xlu0 %876, %v811
        %v878 = vpop.permute.xlu0 %877
        %881 = vset.pattern.permute.xlu0 0
        %882 = vperm.xlu0 %881, %v812
        %v883 = vpop.permute.xlu0 %882
        %886 = vset.pattern.permute.xlu0 0
        %887 = vperm.xlu0 %886, %v813
        %v888 = vpop.permute.xlu0 %887
        %891 = vset.pattern.permute.xlu0 0
        %892 = vperm.xlu0 %891, %v814
        %v893 = vpop.permute.xlu0 %892
        %896 = vset.pattern.permute.xlu0 0
        %897 = vperm.xlu0 %896, %v815
        %v898 = vpop.permute.xlu0 %897
        %901 = vset.pattern.permute.xlu0 0
        %902 = vperm.xlu0 %901, %v816
        %v903 = vpop.permute.xlu0 %902
        %906 = vset.pattern.permute.xlu0 0
        %907 = vperm.xlu0 %906, %v817
        %v908 = vpop.permute.xlu0 %907
        %911 = vset.pattern.permute.xlu0 0
        %912 = vperm.xlu0 %911, %v818
        %v913 = vpop.permute.xlu0 %912
        %916 = vset.pattern.permute.xlu0 0
        %917 = vperm.xlu0 %916, %v819
        %v918 = vpop.permute.xlu0 %917
        %921 = vset.pattern.permute.xlu0 0
        %922 = vperm.xlu0 %921, %v820
        %v923 = vpop.permute.xlu0 %922
        %926 = vset.pattern.permute.xlu0 0
        %927 = vperm.xlu0 %926, %v821
        %v928 = vpop.permute.xlu0 %927
        %931 = vset.pattern.permute.xlu0 0
        %932 = vperm.xlu0 %931, %v822
        %v933 = vpop.permute.xlu0 %932
        %936 = vset.pattern.permute.xlu0 0
        %937 = vperm.xlu0 %936, %v823
        %v938 = vpop.permute.xlu0 %937
        %941 = vset.pattern.permute.xlu0 0
        %942 = vperm.xlu0 %941, %v824
        %v943 = vpop.permute.xlu0 %942
        %946 = vset.pattern.permute.xlu0 0
        %947 = vperm.xlu0 %946, %v825
        %v948 = vpop.permute.xlu0 %947
        %951 = vset.pattern.permute.xlu0 0
        %952 = vperm.xlu0 %951, %v826
        %v953 = vpop.permute.xlu0 %952
        %956 = vset.pattern.permute.xlu0 0
        %957 = vperm.xlu0 %956, %v827
        %v958 = vpop.permute.xlu0 %957
        %961 = vset.pattern.permute.xlu0 0
        %962 = vperm.xlu0 %961, %v828
        %v963 = vpop.permute.xlu0 %962
        %966 = vset.pattern.permute.xlu0 0
        %967 = vperm.xlu0 %966, %v829
        %v968 = vpop.permute.xlu0 %967
        %971 = vset.pattern.permute.xlu0 0
        %972 = vperm.xlu0 %971, %v830
        %v973 = vpop.permute.xlu0 %972
        %976 = vset.pattern.permute.xlu0 0
        %977 = vperm.xlu0 %976, %v831
        %v978 = vpop.permute.xlu0 %977
        %981 = vset.pattern.permute.xlu0 0
        %982 = vperm.xlu0 %981, %v832
        %v983 = vpop.permute.xlu0 %982
        %986 = vset.pattern.permute.xlu0 0
        %987 = vperm.xlu0 %986, %v833
        %v988 = vpop.permute.xlu0 %987
        %991 = vset.pattern.permute.xlu0 0
        %992 = vperm.xlu0 %991, %v834
        %v993 = vpop.permute.xlu0 %992
        %v995 = vadd.f32 %v739, %v838
        %v996 = vadd.f32 %v740, %v838
        %v997 = vadd.f32 %v741, %v843
        %v998 = vadd.f32 %v742, %v843
        %v999 = vadd.f32 %v743, %v848
        %v1000 = vadd.f32 %v744, %v848
        %v1001 = vadd.f32 %v745, %v853
        %v1002 = vadd.f32 %v746, %v853
        %v1003 = vadd.f32 %v747, %v858
        %v1004 = vadd.f32 %v748, %v858
        %v1005 = vadd.f32 %v749, %v863
        %v1006 = vadd.f32 %v750, %v863
        %v1007 = vadd.f32 %v751, %v868
        %v1008 = vadd.f32 %v752, %v868
        %v1009 = vadd.f32 %v753, %v873
        %v1010 = vadd.f32 %v754, %v873
        %v1011 = vadd.f32 %v755, %v878
        %v1012 = vadd.f32 %v756, %v878
        %v1013 = vadd.f32 %v757, %v883
        %v1014 = vadd.f32 %v758, %v883
        %v1015 = vadd.f32 %v759, %v888
        %v1016 = vadd.f32 %v760, %v888
        %v1017 = vadd.f32 %v761, %v893
        %v1018 = vadd.f32 %v762, %v893
        %v1019 = vadd.f32 %v763, %v898
        %v1020 = vadd.f32 %v764, %v898
        %v1021 = vadd.f32 %v765, %v903
        %v1022 = vadd.f32 %v766, %v903
        %v1023 = vadd.f32 %v767, %v908
        %v1024 = vadd.f32 %v768, %v908
        %v1025 = vadd.f32 %v769, %v913
        %v1026 = vadd.f32 %v770, %v913
        %v1027 = vadd.f32 %v771, %v918
        %v1028 = vadd.f32 %v772, %v918
        %v1029 = vadd.f32 %v773, %v923
        %v1030 = vadd.f32 %v774, %v923
        %v1031 = vadd.f32 %v775, %v928
        %v1032 = vadd.f32 %v776, %v928
        %v1033 = vadd.f32 %v777, %v933
        %v1034 = vadd.f32 %v778, %v933
        %v1035 = vadd.f32 %v779, %v938
        %v1036 = vadd.f32 %v780, %v938
        %v1037 = vadd.f32 %v781, %v943
        %v1038 = vadd.f32 %v782, %v943
        %v1039 = vadd.f32 %v783, %v948
        %v1040 = vadd.f32 %v784, %v948
        %v1041 = vadd.f32 %v785, %v953
        %v1042 = vadd.f32 %v786, %v953
        %v1043 = vadd.f32 %v787, %v958
        %v1044 = vadd.f32 %v788, %v958
        %v1045 = vadd.f32 %v789, %v963
        %v1046 = vadd.f32 %v790, %v963
        %v1047 = vadd.f32 %v791, %v968
        %v1048 = vadd.f32 %v792, %v968
        %v1049 = vadd.f32 %v793, %v973
        %v1050 = vadd.f32 %v794, %v973
        %v1051 = vadd.f32 %v795, %v978
        %v1052 = vadd.f32 %v796, %v978
        %v1053 = vadd.f32 %v797, %v983
        %v1054 = vadd.f32 %v798, %v983
        %v1055 = vadd.f32 %v799, %v988
        %v1056 = vadd.f32 %v800, %v988
        %v1057 = vadd.f32 %v801, %v993
        %v1058 = vadd.f32 %v802, %v993
        %v1059 = vtanh.pop %v995
        %v1060 = vtanh.pop %v996
        %v1061 = vtanh.pop %v997
        %v1062 = vtanh.pop %v998
        %v1063 = vtanh.pop %v999
        %v1064 = vtanh.pop %v1000
        %v1065 = vtanh.pop %v1001
        %v1066 = vtanh.pop %v1002
        %v1067 = vtanh.pop %v1003
        %v1068 = vtanh.pop %v1004
        %v1069 = vtanh.pop %v1005
        %v1070 = vtanh.pop %v1006
        %v1071 = vtanh.pop %v1007
        %v1072 = vtanh.pop %v1008
        %v1073 = vtanh.pop %v1009
        %v1074 = vtanh.pop %v1010
        %v1075 = vtanh.pop %v1011
        %v1076 = vtanh.pop %v1012
        %v1077 = vtanh.pop %v1013
        %v1078 = vtanh.pop %v1014
        %v1079 = vtanh.pop %v1015
        %v1080 = vtanh.pop %v1016
        %v1081 = vtanh.pop %v1017
        %v1082 = vtanh.pop %v1018
        %v1083 = vtanh.pop %v1019
        %v1084 = vtanh.pop %v1020
        %v1085 = vtanh.pop %v1021
        %v1086 = vtanh.pop %v1022
        %v1087 = vtanh.pop %v1023
        %v1088 = vtanh.pop %v1024
        %v1089 = vtanh.pop %v1025
        %v1090 = vtanh.pop %v1026
        %v1091 = vtanh.pop %v1027
        %v1092 = vtanh.pop %v1028
        %v1093 = vtanh.pop %v1029
        %v1094 = vtanh.pop %v1030
        %v1095 = vtanh.pop %v1031
        %v1096 = vtanh.pop %v1032
        %v1097 = vtanh.pop %v1033
        %v1098 = vtanh.pop %v1034
        %v1099 = vtanh.pop %v1035
        %v1100 = vtanh.pop %v1036
        %v1101 = vtanh.pop %v1037
        %v1102 = vtanh.pop %v1038
        %v1103 = vtanh.pop %v1039
        %v1104 = vtanh.pop %v1040
        %v1105 = vtanh.pop %v1041
        %v1106 = vtanh.pop %v1042
        %v1107 = vtanh.pop %v1043
        %v1108 = vtanh.pop %v1044
        %v1109 = vtanh.pop %v1045
        %v1110 = vtanh.pop %v1046
        %v1111 = vtanh.pop %v1047
        %v1112 = vtanh.pop %v1048
        %v1113 = vtanh.pop %v1049
        %v1114 = vtanh.pop %v1050
        %v1115 = vtanh.pop %v1051
        %v1116 = vtanh.pop %v1052
        %v1117 = vtanh.pop %v1053
        %v1118 = vtanh.pop %v1054
        %v1119 = vtanh.pop %v1055
        %v1120 = vtanh.pop %v1056
        %v1121 = vtanh.pop %v1057
        %v1122 = vtanh.pop %v1058
        %v1123 = vld [vmem:[%s3] sm:$0xff]
        %v1124 = vld [vmem:[%s3 + $0x8] sm:$0xff]
        %v1125 = vld [vmem:[%s3 + $0x10] sm:$0xff]
        %v1126 = vld [vmem:[%s3 + $0x18] sm:$0xff]
        %v1127 = vld [vmem:[%s3 + $0x20] sm:$0xff]
        %v1128 = vld [vmem:[%s3 + $0x28] sm:$0xff]
        %v1129 = vld [vmem:[%s3 + $0x30] sm:$0xff]
        %v1130 = vld [vmem:[%s3 + $0x38] sm:$0xff]
        %v1131 = vld [vmem:[%s3 + $0x40] sm:$0xff]
        %v1132 = vld [vmem:[%s3 + $0x48] sm:$0xff]
        %v1133 = vld [vmem:[%s3 + $0x50] sm:$0xff]
        %v1134 = vld [vmem:[%s3 + $0x58] sm:$0xff]
        %v1135 = vld [vmem:[%s3 + $0x60] sm:$0xff]
        %v1136 = vld [vmem:[%s3 + $0x68] sm:$0xff]
        %v1137 = vld [vmem:[%s3 + $0x70] sm:$0xff]
        %v1138 = vld [vmem:[%s3 + $0x78] sm:$0xff]
        %v1139 = vld [vmem:[%s3 + $0x80] sm:$0xff]
        %v1140 = vld [vmem:[%s3 + $0x88] sm:$0xff]
        %v1141 = vld [vmem:[%s3 + $0x90] sm:$0xff]
        %v1142 = vld [vmem:[%s3 + $0x98] sm:$0xff]
        %v1143 = vld [vmem:[%s3 + $0xa0] sm:$0xff]
        %v1144 = vld [vmem:[%s3 + $0xa8] sm:$0xff]
        %v1145 = vld [vmem:[%s3 + $0xb0] sm:$0xff]
        %v1146 = vld [vmem:[%s3 + $0xb8] sm:$0xff]
        %v1147 = vld [vmem:[%s3 + $0xc0] sm:$0xff]
        %v1148 = vld [vmem:[%s3 + $0xc8] sm:$0xff]
        %v1149 = vld [vmem:[%s3 + $0xd0] sm:$0xff]
        %v1150 = vld [vmem:[%s3 + $0xd8] sm:$0xff]
        %v1151 = vld [vmem:[%s3 + $0xe0] sm:$0xff]
        %v1152 = vld [vmem:[%s3 + $0xe8] sm:$0xff]
        %v1153 = vld [vmem:[%s3 + $0xf0] sm:$0xff]
        %v1154 = vld [vmem:[%s3 + $0xf8] sm:$0xff]
        %v1155 = vld [vmem:[%s3 + $0x100] sm:$0xff]
        %v1156 = vld [vmem:[%s3 + $0x108] sm:$0xff]
        %v1157 = vld [vmem:[%s3 + $0x110] sm:$0xff]
        %v1158 = vld [vmem:[%s3 + $0x118] sm:$0xff]
        %v1159 = vld [vmem:[%s3 + $0x120] sm:$0xff]
        %v1160 = vld [vmem:[%s3 + $0x128] sm:$0xff]
        %v1161 = vld [vmem:[%s3 + $0x130] sm:$0xff]
        %v1162 = vld [vmem:[%s3 + $0x138] sm:$0xff]
        %v1163 = vld [vmem:[%s3 + $0x140] sm:$0xff]
        %v1164 = vld [vmem:[%s3 + $0x148] sm:$0xff]
        %v1165 = vld [vmem:[%s3 + $0x150] sm:$0xff]
        %v1166 = vld [vmem:[%s3 + $0x158] sm:$0xff]
        %v1167 = vld [vmem:[%s3 + $0x160] sm:$0xff]
        %v1168 = vld [vmem:[%s3 + $0x168] sm:$0xff]
        %v1169 = vld [vmem:[%s3 + $0x170] sm:$0xff]
        %v1170 = vld [vmem:[%s3 + $0x178] sm:$0xff]
        %v1171 = vld [vmem:[%s3 + $0x180] sm:$0xff]
        %v1172 = vld [vmem:[%s3 + $0x188] sm:$0xff]
        %v1173 = vld [vmem:[%s3 + $0x190] sm:$0xff]
        %v1174 = vld [vmem:[%s3 + $0x198] sm:$0xff]
        %v1175 = vld [vmem:[%s3 + $0x1a0] sm:$0xff]
        %v1176 = vld [vmem:[%s3 + $0x1a8] sm:$0xff]
        %v1177 = vld [vmem:[%s3 + $0x1b0] sm:$0xff]
        %v1178 = vld [vmem:[%s3 + $0x1b8] sm:$0xff]
        %v1179 = vld [vmem:[%s3 + $0x1c0] sm:$0xff]
        %v1180 = vld [vmem:[%s3 + $0x1c8] sm:$0xff]
        %v1181 = vld [vmem:[%s3 + $0x1d0] sm:$0xff]
        %v1182 = vld [vmem:[%s3 + $0x1d8] sm:$0xff]
        %v1183 = vld [vmem:[%s3 + $0x1e0] sm:$0xff]
        %v1184 = vld [vmem:[%s3 + $0x1e8] sm:$0xff]
        %v1185 = vld [vmem:[%s3 + $0x1f0] sm:$0xff]
        %v1186 = vld [vmem:[%s3 + $0x1f8] sm:$0xff]
        %v1187 = vld [vmem:[%s4] sm:$0xff]
        %v1188 = vld [vmem:[%s4 + $0x8] sm:$0xff]
        %v1189 = vld [vmem:[%s4 + $0x10] sm:$0xff]
        %v1190 = vld [vmem:[%s4 + $0x18] sm:$0xff]
        %v1191 = vld [vmem:[%s4 + $0x20] sm:$0xff]
        %v1192 = vld [vmem:[%s4 + $0x28] sm:$0xff]
        %v1193 = vld [vmem:[%s4 + $0x30] sm:$0xff]
        %v1194 = vld [vmem:[%s4 + $0x38] sm:$0xff]
        %v1195 = vld [vmem:[%s4 + $0x40] sm:$0xff]
        %v1196 = vld [vmem:[%s4 + $0x48] sm:$0xff]
        %v1197 = vld [vmem:[%s4 + $0x50] sm:$0xff]
        %v1198 = vld [vmem:[%s4 + $0x58] sm:$0xff]
        %v1199 = vld [vmem:[%s4 + $0x60] sm:$0xff]
        %v1200 = vld [vmem:[%s4 + $0x68] sm:$0xff]
        %v1201 = vld [vmem:[%s4 + $0x70] sm:$0xff]
        %v1202 = vld [vmem:[%s4 + $0x78] sm:$0xff]
        %v1203 = vld [vmem:[%s4 + $0x80] sm:$0xff]
        %v1204 = vld [vmem:[%s4 + $0x88] sm:$0xff]
        %v1205 = vld [vmem:[%s4 + $0x90] sm:$0xff]
        %v1206 = vld [vmem:[%s4 + $0x98] sm:$0xff]
        %v1207 = vld [vmem:[%s4 + $0xa0] sm:$0xff]
        %v1208 = vld [vmem:[%s4 + $0xa8] sm:$0xff]
        %v1209 = vld [vmem:[%s4 + $0xb0] sm:$0xff]
        %v1210 = vld [vmem:[%s4 + $0xb8] sm:$0xff]
        %v1211 = vld [vmem:[%s4 + $0xc0] sm:$0xff]
        %v1212 = vld [vmem:[%s4 + $0xc8] sm:$0xff]
        %v1213 = vld [vmem:[%s4 + $0xd0] sm:$0xff]
        %v1214 = vld [vmem:[%s4 + $0xd8] sm:$0xff]
        %v1215 = vld [vmem:[%s4 + $0xe0] sm:$0xff]
        %v1216 = vld [vmem:[%s4 + $0xe8] sm:$0xff]
        %v1217 = vld [vmem:[%s4 + $0xf0] sm:$0xff]
        %v1218 = vld [vmem:[%s4 + $0xf8] sm:$0xff]
        %1220 = vset.pattern.permute.xlu0 0
        %1221 = vperm.xlu0 %1220, %v1187
        %v1222 = vpop.permute.xlu0 %1221
        %1225 = vset.pattern.permute.xlu0 0
        %1226 = vperm.xlu0 %1225, %v1188
        %v1227 = vpop.permute.xlu0 %1226
        %1230 = vset.pattern.permute.xlu0 0
        %1231 = vperm.xlu0 %1230, %v1189
        %v1232 = vpop.permute.xlu0 %1231
        %1235 = vset.pattern.permute.xlu0 0
        %1236 = vperm.xlu0 %1235, %v1190
        %v1237 = vpop.permute.xlu0 %1236
        %1240 = vset.pattern.permute.xlu0 0
        %1241 = vperm.xlu0 %1240, %v1191
        %v1242 = vpop.permute.xlu0 %1241
        %1245 = vset.pattern.permute.xlu0 0
        %1246 = vperm.xlu0 %1245, %v1192
        %v1247 = vpop.permute.xlu0 %1246
        %1250 = vset.pattern.permute.xlu0 0
        %1251 = vperm.xlu0 %1250, %v1193
        %v1252 = vpop.permute.xlu0 %1251
        %1255 = vset.pattern.permute.xlu0 0
        %1256 = vperm.xlu0 %1255, %v1194
        %v1257 = vpop.permute.xlu0 %1256
        %1260 = vset.pattern.permute.xlu0 0
        %1261 = vperm.xlu0 %1260, %v1195
        %v1262 = vpop.permute.xlu0 %1261
        %1265 = vset.pattern.permute.xlu0 0
        %1266 = vperm.xlu0 %1265, %v1196
        %v1267 = vpop.permute.xlu0 %1266
        %1270 = vset.pattern.permute.xlu0 0
        %1271 = vperm.xlu0 %1270, %v1197
        %v1272 = vpop.permute.xlu0 %1271
        %1275 = vset.pattern.permute.xlu0 0
        %1276 = vperm.xlu0 %1275, %v1198
        %v1277 = vpop.permute.xlu0 %1276
        %1280 = vset.pattern.permute.xlu0 0
        %1281 = vperm.xlu0 %1280, %v1199
        %v1282 = vpop.permute.xlu0 %1281
        %1285 = vset.pattern.permute.xlu0 0
        %1286 = vperm.xlu0 %1285, %v1200
        %v1287 = vpop.permute.xlu0 %1286
        %1290 = vset.pattern.permute.xlu0 0
        %1291 = vperm.xlu0 %1290, %v1201
        %v1292 = vpop.permute.xlu0 %1291
        %1295 = vset.pattern.permute.xlu0 0
        %1296 = vperm.xlu0 %1295, %v1202
        %v1297 = vpop.permute.xlu0 %1296
        %1300 = vset.pattern.permute.xlu0 0
        %1301 = vperm.xlu0 %1300, %v1203
        %v1302 = vpop.permute.xlu0 %1301
        %1305 = vset.pattern.permute.xlu0 0
        %1306 = vperm.xlu0 %1305, %v1204
        %v1307 = vpop.permute.xlu0 %1306
        %1310 = vset.pattern.permute.xlu0 0
        %1311 = vperm.xlu0 %1310, %v1205
        %v1312 = vpop.permute.xlu0 %1311
        %1315 = vset.pattern.permute.xlu0 0
        %1316 = vperm.xlu0 %1315, %v1206
        %v1317 = vpop.permute.xlu0 %1316
        %1320 = vset.pattern.permute.xlu0 0
        %1321 = vperm.xlu0 %1320, %v1207
        %v1322 = vpop.permute.xlu0 %1321
        %1325 = vset.pattern.permute.xlu0 0
        %1326 = vperm.xlu0 %1325, %v1208
        %v1327 = vpop.permute.xlu0 %1326
        %1330 = vset.pattern.permute.xlu0 0
        %1331 = vperm.xlu0 %1330, %v1209
        %v1332 = vpop.permute.xlu0 %1331
        %1335 = vset.pattern.permute.xlu0 0
        %1336 = vperm.xlu0 %1335, %v1210
        %v1337 = vpop.permute.xlu0 %1336
        %1340 = vset.pattern.permute.xlu0 0
        %1341 = vperm.xlu0 %1340, %v1211
        %v1342 = vpop.permute.xlu0 %1341
        %1345 = vset.pattern.permute.xlu0 0
        %1346 = vperm.xlu0 %1345, %v1212
        %v1347 = vpop.permute.xlu0 %1346
        %1350 = vset.pattern.permute.xlu0 0
        %1351 = vperm.xlu0 %1350, %v1213
        %v1352 = vpop.permute.xlu0 %1351
        %1355 = vset.pattern.permute.xlu0 0
        %1356 = vperm.xlu0 %1355, %v1214
        %v1357 = vpop.permute.xlu0 %1356
        %1360 = vset.pattern.permute.xlu0 0
        %1361 = vperm.xlu0 %1360, %v1215
        %v1362 = vpop.permute.xlu0 %1361
        %1365 = vset.pattern.permute.xlu0 0
        %1366 = vperm.xlu0 %1365, %v1216
        %v1367 = vpop.permute.xlu0 %1366
        %1370 = vset.pattern.permute.xlu0 0
        %1371 = vperm.xlu0 %1370, %v1217
        %v1372 = vpop.permute.xlu0 %1371
        %1375 = vset.pattern.permute.xlu0 0
        %1376 = vperm.xlu0 %1375, %v1218
        %v1377 = vpop.permute.xlu0 %1376
        %1379 = vmatprep.subr.mxu0 %v1060
        %1380 = vmatpush1.msra.mxu0 %v1059
        %1381 = vmatprep.subr.mxu0 %v1062
        %1382 = vmatpush1.msra.mxu0 %v1061
        %1383 = vmatprep.subr.mxu0 %v1064
        %1384 = vmatpush1.msra.mxu0 %v1063
        %1385 = vmatprep.subr.mxu0 %v1066
        %1386 = vmatpush1.msra.mxu0 %v1065
        %1387 = vmatprep.subr.mxu0 %v1068
        %1388 = vmatpush1.msra.mxu0 %v1067
        %1389 = vmatprep.subr.mxu0 %v1070
        %1390 = vmatpush1.msra.mxu0 %v1069
        %1391 = vmatprep.subr.mxu0 %v1072
        %1392 = vmatpush1.msra.mxu0 %v1071
        %1393 = vmatprep.subr.mxu0 %v1074
        %1394 = vmatpush1.msra.mxu0 %v1073
        %1395 = vmatprep.subr.mxu0 %v1076
        %1396 = vmatpush1.msra.mxu0 %v1075
        %1397 = vmatprep.subr.mxu0 %v1078
        %1398 = vmatpush1.msra.mxu0 %v1077
        %1399 = vmatprep.subr.mxu0 %v1080
        %1400 = vmatpush1.msra.mxu0 %v1079
        %1401 = vmatprep.subr.mxu0 %v1082
        %1402 = vmatpush1.msra.mxu0 %v1081
        %1403 = vmatprep.subr.mxu0 %v1084
        %1404 = vmatpush1.msra.mxu0 %v1083
        %1405 = vmatprep.subr.mxu0 %v1086
        %1406 = vmatpush1.msra.mxu0 %v1085
        %1407 = vmatprep.subr.mxu0 %v1088
        %1408 = vmatpush1.msra.mxu0 %v1087
        %1409 = vmatprep.subr.mxu0 %v1090
        %1410 = vmatpush1.msra.mxu0 %v1089
        %1411 = vmatprep.subr.mxu0 %v1092
        %1412 = vmatpush1.msra.mxu0 %v1091
        %1413 = vmatprep.subr.mxu0 %v1094
        %1414 = vmatpush1.msra.mxu0 %v1093
        %1415 = vmatprep.subr.mxu0 %v1096
        %1416 = vmatpush1.msra.mxu0 %v1095
        %1417 = vmatprep.subr.mxu0 %v1098
        %1418 = vmatpush1.msra.mxu0 %v1097
        %1419 = vmatprep.subr.mxu0 %v1100
        %1420 = vmatpush1.msra.mxu0 %v1099
        %1421 = vmatprep.subr.mxu0 %v1102
        %1422 = vmatpush1.msra.mxu0 %v1101
        %1423 = vmatprep.subr.mxu0 %v1104
        %1424 = vmatpush1.msra.mxu0 %v1103
        %1425 = vmatprep.subr.mxu0 %v1106
        %1426 = vmatpush1.msra.mxu0 %v1105
        %1427 = vmatprep.subr.mxu0 %v1108
        %1428 = vmatpush1.msra.mxu0 %v1107
        %1429 = vmatprep.subr.mxu0 %v1110
        %1430 = vmatpush1.msra.mxu0 %v1109
        %1431 = vmatprep.subr.mxu0 %v1112
        %1432 = vmatpush1.msra.mxu0 %v1111
        %1433 = vmatprep.subr.mxu0 %v1114
        %1434 = vmatpush1.msra.mxu0 %v1113
        %1435 = vmatprep.subr.mxu0 %v1116
        %1436 = vmatpush1.msra.mxu0 %v1115
        %1437 = vmatprep.subr.mxu0 %v1118
        %1438 = vmatpush1.msra.mxu0 %v1117
        %1439 = vmatprep.subr.mxu0 %v1120
        %1440 = vmatpush1.msra.mxu0 %v1119
        %1441 = vmatprep.subr.mxu0 %v1122
        %1442 = vmatpush1.msra.mxu0 %v1121
        %1443 = vmatprep.mubr.f32.mxu0 %v1124
        %1444 = vmatmul.mubr.f32.gmra.mrb[0].mxu0 %v1123
        %v1445 = vpop.f32.mrb[0].mxu0
        %v1446 = vadd.f32 %v1222, %v1445
        %v1447 = vpop.f32.mrb[0].mxu0
        %v1448 = vadd.f32 %v1222, %v1447
        %1449 = vmatprep.mubr.f32.mxu0 %v1126
        %1450 = vmatmul.mubr.f32.gmra.mrb[0].mxu0 %v1125
        %v1451 = vpop.f32.mrb[0].mxu0
        %v1452 = vadd.f32 %v1227, %v1451
        %v1453 = vpop.f32.mrb[0].mxu0
        %v1454 = vadd.f32 %v1227, %v1453
        %1455 = vmatprep.mubr.f32.mxu0 %v1128
        %1456 = vmatmul.mubr.f32.gmra.mrb[0].mxu0 %v1127
        %v1457 = vpop.f32.mrb[0].mxu0
        %v1458 = vadd.f32 %v1232, %v1457
        %v1459 = vpop.f32.mrb[0].mxu0
        %v1460 = vadd.f32 %v1232, %v1459
        %1461 = vmatprep.mubr.f32.mxu0 %v1130
        %1462 = vmatmul.mubr.f32.gmra.mrb[0].mxu0 %v1129
        %v1463 = vpop.f32.mrb[0].mxu0
        %v1464 = vadd.f32 %v1237, %v1463
        %v1465 = vpop.f32.mrb[0].mxu0
        %v1466 = vadd.f32 %v1237, %v1465
        %1467 = vmatprep.mubr.f32.mxu0 %v1132
        %1468 = vmatmul.mubr.f32.gmra.mrb[0].mxu0 %v1131
        %v1469 = vpop.f32.mrb[0].mxu0
        %v1470 = vadd.f32 %v1242, %v1469
        %v1471 = vpop.f32.mrb[0].mxu0
        %v1472 = vadd.f32 %v1242, %v1471
        %1473 = vmatprep.mubr.f32.mxu0 %v1134
        %1474 = vmatmul.mubr.f32.gmra.mrb[0].mxu0 %v1133
        %v1475 = vpop.f32.mrb[0].mxu0
        %v1476 = vadd.f32 %v1247, %v1475
        %v1477 = vpop.f32.mrb[0].mxu0
        %v1478 = vadd.f32 %v1247, %v1477
        %1479 = vmatprep.mubr.f32.mxu0 %v1136
        %1480 = vmatmul.mubr.f32.gmra.mrb[0].mxu0 %v1135
        %v1481 = vpop.f32.mrb[0].mxu0
        %v1482 = vadd.f32 %v1252, %v1481
        %v1483 = vpop.f32.mrb[0].mxu0
        %v1484 = vadd.f32 %v1252, %v1483
        %1485 = vmatprep.mubr.f32.mxu0 %v1138
        %1486 = vmatmul.mubr.f32.gmra.mrb[0].mxu0 %v1137
        %v1487 = vpop.f32.mrb[0].mxu0
        %v1488 = vadd.f32 %v1257, %v1487
        %v1489 = vpop.f32.mrb[0].mxu0
        %v1490 = vadd.f32 %v1257, %v1489
        %1491 = vmatprep.mubr.f32.mxu0 %v1140
        %1492 = vmatmul.mubr.f32.gmra.mrb[0].mxu0 %v1139
        %v1493 = vpop.f32.mrb[0].mxu0
        %v1494 = vadd.f32 %v1262, %v1493
        %v1495 = vpop.f32.mrb[0].mxu0
        %v1496 = vadd.f32 %v1262, %v1495
        %1497 = vmatprep.mubr.f32.mxu0 %v1142
        %1498 = vmatmul.mubr.f32.gmra.mrb[0].mxu0 %v1141
        %v1499 = vpop.f32.mrb[0].mxu0
        %v1500 = vadd.f32 %v1267, %v1499
        %v1501 = vpop.f32.mrb[0].mxu0
        %v1502 = vadd.f32 %v1267, %v1501
        %1503 = vmatprep.mubr.f32.mxu0 %v1144
        %1504 = vmatmul.mubr.f32.gmra.mrb[0].mxu0 %v1143
        %v1505 = vpop.f32.mrb[0].mxu0
        %v1506 = vadd.f32 %v1272, %v1505
        %v1507 = vpop.f32.mrb[0].mxu0
        %v1508 = vadd.f32 %v1272, %v1507
        %1509 = vmatprep.mubr.f32.mxu0 %v1146
        %1510 = vmatmul.mubr.f32.gmra.mrb[0].mxu0 %v1145
        %v1511 = vpop.f32.mrb[0].mxu0
        %v1512 = vadd.f32 %v1277, %v1511
        %v1513 = vpop.f32.mrb[0].mxu0
        %v1514 = vadd.f32 %v1277, %v1513
        %1515 = vmatprep.mubr.f32.mxu0 %v1148
        %1516 = vmatmul.mubr.f32.gmra.mrb[0].mxu0 %v1147
        %v1517 = vpop.f32.mrb[0].mxu0
        %v1518 = vadd.f32 %v1282, %v1517
        %v1519 = vpop.f32.mrb[0].mxu0
        %v1520 = vadd.f32 %v1282, %v1519
        %1521 = vmatprep.mubr.f32.mxu0 %v1150
        %1522 = vmatmul.mubr.f32.gmra.mrb[0].mxu0 %v1149
        %v1523 = vpop.f32.mrb[0].mxu0
        %v1524 = vadd.f32 %v1287, %v1523
        %v1525 = vpop.f32.mrb[0].mxu0
        %v1526 = vadd.f32 %v1287, %v1525
        %1527 = vmatprep.mubr.f32.mxu0 %v1152
        %1528 = vmatmul.mubr.f32.gmra.mrb[0].mxu0 %v1151
        %v1529 = vpop.f32.mrb[0].mxu0
        %v1530 = vadd.f32 %v1292, %v1529
        %v1531 = vpop.f32.mrb[0].mxu0
        %v1532 = vadd.f32 %v1292, %v1531
        %1533 = vmatprep.mubr.f32.mxu0 %v1154
        %1534 = vmatmul.mubr.f32.gmra.mrb[0].mxu0 %v1153
        %v1535 = vpop.f32.mrb[0].mxu0
        %v1536 = vadd.f32 %v1297, %v1535
        %v1537 = vpop.f32.mrb[0].mxu0
        %v1538 = vadd.f32 %v1297, %v1537
        %1539 = vmatprep.mubr.f32.mxu0 %v1156
        %1540 = vmatmul.mubr.f32.gmra.mrb[0].mxu0 %v1155
        %v1541 = vpop.f32.mrb[0].mxu0
        %v1542 = vadd.f32 %v1302, %v1541
        %v1543 = vpop.f32.mrb[0].mxu0
        %v1544 = vadd.f32 %v1302, %v1543
        %1545 = vmatprep.mubr.f32.mxu0 %v1158
        %1546 = vmatmul.mubr.f32.gmra.mrb[0].mxu0 %v1157
        %v1547 = vpop.f32.mrb[0].mxu0
        %v1548 = vadd.f32 %v1307, %v1547
        %v1549 = vpop.f32.mrb[0].mxu0
        %v1550 = vadd.f32 %v1307, %v1549
        %1551 = vmatprep.mubr.f32.mxu0 %v1160
        %1552 = vmatmul.mubr.f32.gmra.mrb[0].mxu0 %v1159
        %v1553 = vpop.f32.mrb[0].mxu0
        %v1554 = vadd.f32 %v1312, %v1553
        %v1555 = vpop.f32.mrb[0].mxu0
        %v1556 = vadd.f32 %v1312, %v1555
        %1557 = vmatprep.mubr.f32.mxu0 %v1162
        %1558 = vmatmul.mubr.f32.gmra.mrb[0].mxu0 %v1161
        %v1559 = vpop.f32.mrb[0].mxu0
        %v1560 = vadd.f32 %v1317, %v1559
        %v1561 = vpop.f32.mrb[0].mxu0
        %v1562 = vadd.f32 %v1317, %v1561
        %1563 = vmatprep.mubr.f32.mxu0 %v1164
        %1564 = vmatmul.mubr.f32.gmra.mrb[0].mxu0 %v1163
        %v1565 = vpop.f32.mrb[0].mxu0
        %v1566 = vadd.f32 %v1322, %v1565
        %v1567 = vpop.f32.mrb[0].mxu0
        %v1568 = vadd.f32 %v1322, %v1567
        %1569 = vmatprep.mubr.f32.mxu0 %v1166
        %1570 = vmatmul.mubr.f32.gmra.mrb[0].mxu0 %v1165
        %v1571 = vpop.f32.mrb[0].mxu0
        %v1572 = vadd.f32 %v1327, %v1571
        %v1573 = vpop.f32.mrb[0].mxu0
        %v1574 = vadd.f32 %v1327, %v1573
        %1575 = vmatprep.mubr.f32.mxu0 %v1168
        %1576 = vmatmul.mubr.f32.gmra.mrb[0].mxu0 %v1167
        %v1577 = vpop.f32.mrb[0].mxu0
        %v1578 = vadd.f32 %v1332, %v1577
        %v1579 = vpop.f32.mrb[0].mxu0
        %v1580 = vadd.f32 %v1332, %v1579
        %1581 = vmatprep.mubr.f32.mxu0 %v1170
        %1582 = vmatmul.mubr.f32.gmra.mrb[0].mxu0 %v1169
        %v1583 = vpop.f32.mrb[0].mxu0
        %v1584 = vadd.f32 %v1337, %v1583
        %v1585 = vpop.f32.mrb[0].mxu0
        %v1586 = vadd.f32 %v1337, %v1585
        %1587 = vmatprep.mubr.f32.mxu0 %v1172
        %1588 = vmatmul.mubr.f32.gmra.mrb[0].mxu0 %v1171
        %v1589 = vpop.f32.mrb[0].mxu0
        %v1590 = vadd.f32 %v1342, %v1589
        %v1591 = vpop.f32.mrb[0].mxu0
        %v1592 = vadd.f32 %v1342, %v1591
        %1593 = vmatprep.mubr.f32.mxu0 %v1174
        %1594 = vmatmul.mubr.f32.gmra.mrb[0].mxu0 %v1173
        %v1595 = vpop.f32.mrb[0].mxu0
        %v1596 = vadd.f32 %v1347, %v1595
        %v1597 = vpop.f32.mrb[0].mxu0
        %v1598 = vadd.f32 %v1347, %v1597
        %1599 = vmatprep.mubr.f32.mxu0 %v1176
        %1600 = vmatmul.mubr.f32.gmra.mrb[0].mxu0 %v1175
        %v1601 = vpop.f32.mrb[0].mxu0
        %v1602 = vadd.f32 %v1352, %v1601
        %v1603 = vpop.f32.mrb[0].mxu0
        %v1604 = vadd.f32 %v1352, %v1603
        %1605 = vmatprep.mubr.f32.mxu0 %v1178
        %1606 = vmatmul.mubr.f32.gmra.mrb[0].mxu0 %v1177
        %v1607 = vpop.f32.mrb[0].mxu0
        %v1608 = vadd.f32 %v1357, %v1607
        %v1609 = vpop.f32.mrb[0].mxu0
        %v1610 = vadd.f32 %v1357, %v1609
        %1611 = vmatprep.mubr.f32.mxu0 %v1180
        %1612 = vmatmul.mubr.f32.gmra.mrb[0].mxu0 %v1179
        %v1613 = vpop.f32.mrb[0].mxu0
        %v1614 = vadd.f32 %v1362, %v1613
        %v1615 = vpop.f32.mrb[0].mxu0
        %v1616 = vadd.f32 %v1362, %v1615
        %1617 = vmatprep.mubr.f32.mxu0 %v1182
        %1618 = vmatmul.mubr.f32.gmra.mrb[0].mxu0 %v1181
        %v1619 = vpop.f32.mrb[0].mxu0
        %v1620 = vadd.f32 %v1367, %v1619
        %v1621 = vpop.f32.mrb[0].mxu0
        %v1622 = vadd.f32 %v1367, %v1621
        %1623 = vmatprep.mubr.f32.mxu0 %v1184
        %1624 = vmatmul.mubr.f32.gmra.mrb[0].mxu0 %v1183
        %v1625 = vpop.f32.mrb[0].mxu0
        %v1626 = vadd.f32 %v1372, %v1625
        %v1627 = vpop.f32.mrb[0].mxu0
        %v1628 = vadd.f32 %v1372, %v1627
        %1629 = vmatprep.mubr.f32.mxu0 %v1186
        %1630 = vmatmul.mubr.f32.gmra.mrb[0].mxu0 %v1185
        %v1631 = vpop.f32.mrb[0].mxu0
        %v1632 = vadd.f32 %v1377, %v1631
        %v1633 = vpop.f32.mrb[0].mxu0
        %v1634 = vadd.f32 %v1377, %v1633
        %1635 = vdwg.mxu0
        %v1636 = vtanh.pop %v1446
        %v1637 = vtanh.pop %v1448
        %v1638 = vtanh.pop %v1452
        %v1639 = vtanh.pop %v1454
        %v1640 = vtanh.pop %v1458
        %v1641 = vtanh.pop %v1460
        %v1642 = vtanh.pop %v1464
        %v1643 = vtanh.pop %v1466
        %v1644 = vtanh.pop %v1470
        %v1645 = vtanh.pop %v1472
        %v1646 = vtanh.pop %v1476
        %v1647 = vtanh.pop %v1478
        %v1648 = vtanh.pop %v1482
        %v1649 = vtanh.pop %v1484
        %v1650 = vtanh.pop %v1488
        %v1651 = vtanh.pop %v1490
        %v1652 = vtanh.pop %v1494
        %v1653 = vtanh.pop %v1496
        %v1654 = vtanh.pop %v1500
        %v1655 = vtanh.pop %v1502
        %v1656 = vtanh.pop %v1506
        %v1657 = vtanh.pop %v1508
        %v1658 = vtanh.pop %v1512
        %v1659 = vtanh.pop %v1514
        %v1660 = vtanh.pop %v1518
        %v1661 = vtanh.pop %v1520
        %v1662 = vtanh.pop %v1524
        %v1663 = vtanh.pop %v1526
        %v1664 = vtanh.pop %v1530
        %v1665 = vtanh.pop %v1532
        %v1666 = vtanh.pop %v1536
        %v1667 = vtanh.pop %v1538
        %v1668 = vtanh.pop %v1542
        %v1669 = vtanh.pop %v1544
        %v1670 = vtanh.pop %v1548
        %v1671 = vtanh.pop %v1550
        %v1672 = vtanh.pop %v1554
        %v1673 = vtanh.pop %v1556
        %v1674 = vtanh.pop %v1560
        %v1675 = vtanh.pop %v1562
        %v1676 = vtanh.pop %v1566
        %v1677 = vtanh.pop %v1568
        %v1678 = vtanh.pop %v1572
        %v1679 = vtanh.pop %v1574
        %v1680 = vtanh.pop %v1578
        %v1681 = vtanh.pop %v1580
        %v1682 = vtanh.pop %v1584
        %v1683 = vtanh.pop %v1586
        %v1684 = vtanh.pop %v1590
        %v1685 = vtanh.pop %v1592
        %v1686 = vtanh.pop %v1596
        %v1687 = vtanh.pop %v1598
        %v1688 = vtanh.pop %v1602
        %v1689 = vtanh.pop %v1604
        %v1690 = vtanh.pop %v1608
        %v1691 = vtanh.pop %v1610
        %v1692 = vtanh.pop %v1614
        %v1693 = vtanh.pop %v1616
        %v1694 = vtanh.pop %v1620
        %v1695 = vtanh.pop %v1622
        %v1696 = vtanh.pop %v1626
        %v1697 = vtanh.pop %v1628
        %v1698 = vtanh.pop %v1632
        %v1699 = vtanh.pop %v1634
        %v1700 = vld [vmem:[%s5] sm:$0xff]
        %v1701 = vld [vmem:[%s5 + $0x8] sm:$0xff]
        %v1702 = vld [vmem:[%s5 + $0x10] sm:$0xff]
        %v1703 = vld [vmem:[%s5 + $0x18] sm:$0xff]
        %v1704 = vld [vmem:[%s5 + $0x20] sm:$0xff]
        %v1705 = vld [vmem:[%s5 + $0x28] sm:$0xff]
        %v1706 = vld [vmem:[%s5 + $0x30] sm:$0xff]
        %v1707 = vld [vmem:[%s5 + $0x38] sm:$0xff]
        %v1708 = vld [vmem:[%s5 + $0x40] sm:$0xff]
        %v1709 = vld [vmem:[%s5 + $0x48] sm:$0xff]
        %v1710 = vld [vmem:[%s5 + $0x50] sm:$0xff]
        %v1711 = vld [vmem:[%s5 + $0x58] sm:$0xff]
        %v1712 = vld [vmem:[%s5 + $0x60] sm:$0xff]
        %v1713 = vld [vmem:[%s5 + $0x68] sm:$0xff]
        %v1714 = vld [vmem:[%s5 + $0x70] sm:$0xff]
        %v1715 = vld [vmem:[%s5 + $0x78] sm:$0xff]
        %v1716 = vld [vmem:[%s5 + $0x80] sm:$0xff]
        %v1717 = vld [vmem:[%s5 + $0x88] sm:$0xff]
        %v1718 = vld [vmem:[%s5 + $0x90] sm:$0xff]
        %v1719 = vld [vmem:[%s5 + $0x98] sm:$0xff]
        %v1720 = vld [vmem:[%s5 + $0xa0] sm:$0xff]
        %v1721 = vld [vmem:[%s5 + $0xa8] sm:$0xff]
        %v1722 = vld [vmem:[%s5 + $0xb0] sm:$0xff]
        %v1723 = vld [vmem:[%s5 + $0xb8] sm:$0xff]
        %v1724 = vld [vmem:[%s5 + $0xc0] sm:$0xff]
        %v1725 = vld [vmem:[%s5 + $0xc8] sm:$0xff]
        %v1726 = vld [vmem:[%s5 + $0xd0] sm:$0xff]
        %v1727 = vld [vmem:[%s5 + $0xd8] sm:$0xff]
        %v1728 = vld [vmem:[%s5 + $0xe0] sm:$0xff]
        %v1729 = vld [vmem:[%s5 + $0xe8] sm:$0xff]
        %v1730 = vld [vmem:[%s5 + $0xf0] sm:$0xff]
        %v1731 = vld [vmem:[%s5 + $0xf8] sm:$0xff]
        %1733 = vset.pattern.permute.xlu0 0
        %1734 = vperm.xlu0 %1733, %v1700
        %v1735 = vpop.permute.xlu0 %1734
        %1738 = vset.pattern.permute.xlu0 0
        %1739 = vperm.xlu0 %1738, %v1701
        %v1740 = vpop.permute.xlu0 %1739
        %1743 = vset.pattern.permute.xlu0 0
        %1744 = vperm.xlu0 %1743, %v1702
        %v1745 = vpop.permute.xlu0 %1744
        %1748 = vset.pattern.permute.xlu0 0
        %1749 = vperm.xlu0 %1748, %v1703
        %v1750 = vpop.permute.xlu0 %1749
        %1753 = vset.pattern.permute.xlu0 0
        %1754 = vperm.xlu0 %1753, %v1704
        %v1755 = vpop.permute.xlu0 %1754
        %1758 = vset.pattern.permute.xlu0 0
        %1759 = vperm.xlu0 %1758, %v1705
        %v1760 = vpop.permute.xlu0 %1759
        %1763 = vset.pattern.permute.xlu0 0
        %1764 = vperm.xlu0 %1763, %v1706
        %v1765 = vpop.permute.xlu0 %1764
        %1768 = vset.pattern.permute.xlu0 0
        %1769 = vperm.xlu0 %1768, %v1707
        %v1770 = vpop.permute.xlu0 %1769
        %1773 = vset.pattern.permute.xlu0 0
        %1774 = vperm.xlu0 %1773, %v1708
        %v1775 = vpop.permute.xlu0 %1774
        %1778 = vset.pattern.permute.xlu0 0
        %1779 = vperm.xlu0 %1778, %v1709
        %v1780 = vpop.permute.xlu0 %1779
        %1783 = vset.pattern.permute.xlu0 0
        %1784 = vperm.xlu0 %1783, %v1710
        %v1785 = vpop.permute.xlu0 %1784
        %1788 = vset.pattern.permute.xlu0 0
        %1789 = vperm.xlu0 %1788, %v1711
        %v1790 = vpop.permute.xlu0 %1789
        %1793 = vset.pattern.permute.xlu0 0
        %1794 = vperm.xlu0 %1793, %v1712
        %v1795 = vpop.permute.xlu0 %1794
        %1798 = vset.pattern.permute.xlu0 0
        %1799 = vperm.xlu0 %1798, %v1713
        %v1800 = vpop.permute.xlu0 %1799
        %1803 = vset.pattern.permute.xlu0 0
        %1804 = vperm.xlu0 %1803, %v1714
        %v1805 = vpop.permute.xlu0 %1804
        %1808 = vset.pattern.permute.xlu0 0
        %1809 = vperm.xlu0 %1808, %v1715
        %v1810 = vpop.permute.xlu0 %1809
        %1813 = vset.pattern.permute.xlu0 0
        %1814 = vperm.xlu0 %1813, %v1716
        %v1815 = vpop.permute.xlu0 %1814
        %1818 = vset.pattern.permute.xlu0 0
        %1819 = vperm.xlu0 %1818, %v1717
        %v1820 = vpop.permute.xlu0 %1819
        %1823 = vset.pattern.permute.xlu0 0
        %1824 = vperm.xlu0 %1823, %v1718
        %v1825 = vpop.permute.xlu0 %1824
        %1828 = vset.pattern.permute.xlu0 0
        %1829 = vperm.xlu0 %1828, %v1719
        %v1830 = vpop.permute.xlu0 %1829
        %1833 = vset.pattern.permute.xlu0 0
        %1834 = vperm.xlu0 %1833, %v1720
        %v1835 = vpop.permute.xlu0 %1834
        %1838 = vset.pattern.permute.xlu0 0
        %1839 = vperm.xlu0 %1838, %v1721
        %v1840 = vpop.permute.xlu0 %1839
        %1843 = vset.pattern.permute.xlu0 0
        %1844 = vperm.xlu0 %1843, %v1722
        %v1845 = vpop.permute.xlu0 %1844
        %1848 = vset.pattern.permute.xlu0 0
        %1849 = vperm.xlu0 %1848, %v1723
        %v1850 = vpop.permute.xlu0 %1849
        %1853 = vset.pattern.permute.xlu0 0
        %1854 = vperm.xlu0 %1853, %v1724
        %v1855 = vpop.permute.xlu0 %1854
        %1858 = vset.pattern.permute.xlu0 0
        %1859 = vperm.xlu0 %1858, %v1725
        %v1860 = vpop.permute.xlu0 %1859
        %1863 = vset.pattern.permute.xlu0 0
        %1864 = vperm.xlu0 %1863, %v1726
        %v1865 = vpop.permute.xlu0 %1864
        %1868 = vset.pattern.permute.xlu0 0
        %1869 = vperm.xlu0 %1868, %v1727
        %v1870 = vpop.permute.xlu0 %1869
        %1873 = vset.pattern.permute.xlu0 0
        %1874 = vperm.xlu0 %1873, %v1728
        %v1875 = vpop.permute.xlu0 %1874
        %1878 = vset.pattern.permute.xlu0 0
        %1879 = vperm.xlu0 %1878, %v1729
        %v1880 = vpop.permute.xlu0 %1879
        %1883 = vset.pattern.permute.xlu0 0
        %1884 = vperm.xlu0 %1883, %v1730
        %v1885 = vpop.permute.xlu0 %1884
        %1888 = vset.pattern.permute.xlu0 0
        %1889 = vperm.xlu0 %1888, %v1731
        %v1890 = vpop.permute.xlu0 %1889
        %v1892 = vmul.f32 %v1636, %v1735
        %v1893 = vmul.f32 %v1637, %v1735
        %v1894 = vmul.f32 %v1638, %v1740
        %v1895 = vmul.f32 %v1639, %v1740
        %v1896 = vmul.f32 %v1640, %v1745
        %v1897 = vmul.f32 %v1641, %v1745
        %v1898 = vmul.f32 %v1642, %v1750
        %v1899 = vmul.f32 %v1643, %v1750
        %v1900 = vmul.f32 %v1644, %v1755
        %v1901 = vmul.f32 %v1645, %v1755
        %v1902 = vmul.f32 %v1646, %v1760
        %v1903 = vmul.f32 %v1647, %v1760
        %v1904 = vmul.f32 %v1648, %v1765
        %v1905 = vmul.f32 %v1649, %v1765
        %v1906 = vmul.f32 %v1650, %v1770
        %v1907 = vmul.f32 %v1651, %v1770
        %v1908 = vmul.f32 %v1652, %v1775
        %v1909 = vmul.f32 %v1653, %v1775
        %v1910 = vmul.f32 %v1654, %v1780
        %v1911 = vmul.f32 %v1655, %v1780
        %v1912 = vmul.f32 %v1656, %v1785
        %v1913 = vmul.f32 %v1657, %v1785
        %v1914 = vmul.f32 %v1658, %v1790
        %v1915 = vmul.f32 %v1659, %v1790
        %v1916 = vmul.f32 %v1660, %v1795
        %v1917 = vmul.f32 %v1661, %v1795
        %v1918 = vmul.f32 %v1662, %v1800
        %v1919 = vmul.f32 %v1663, %v1800
        %v1920 = vmul.f32 %v1664, %v1805
        %v1921 = vmul.f32 %v1665, %v1805
        %v1922 = vmul.f32 %v1666, %v1810
        %v1923 = vmul.f32 %v1667, %v1810
        %v1924 = vmul.f32 %v1668, %v1815
        %v1925 = vmul.f32 %v1669, %v1815
        %v1926 = vmul.f32 %v1670, %v1820
        %v1927 = vmul.f32 %v1671, %v1820
        %v1928 = vmul.f32 %v1672, %v1825
        %v1929 = vmul.f32 %v1673, %v1825
        %v1930 = vmul.f32 %v1674, %v1830
        %v1931 = vmul.f32 %v1675, %v1830
        %v1932 = vmul.f32 %v1676, %v1835
        %v1933 = vmul.f32 %v1677, %v1835
        %v1934 = vmul.f32 %v1678, %v1840
        %v1935 = vmul.f32 %v1679, %v1840
        %v1936 = vmul.f32 %v1680, %v1845
        %v1937 = vmul.f32 %v1681, %v1845
        %v1938 = vmul.f32 %v1682, %v1850
        %v1939 = vmul.f32 %v1683, %v1850
        %v1940 = vmul.f32 %v1684, %v1855
        %v1941 = vmul.f32 %v1685, %v1855
        %v1942 = vmul.f32 %v1686, %v1860
        %v1943 = vmul.f32 %v1687, %v1860
        %v1944 = vmul.f32 %v1688, %v1865
        %v1945 = vmul.f32 %v1689, %v1865
        %v1946 = vmul.f32 %v1690, %v1870
        %v1947 = vmul.f32 %v1691, %v1870
        %v1948 = vmul.f32 %v1692, %v1875
        %v1949 = vmul.f32 %v1693, %v1875
        %v1950 = vmul.f32 %v1694, %v1880
        %v1951 = vmul.f32 %v1695, %v1880
        %v1952 = vmul.f32 %v1696, %v1885
        %v1953 = vmul.f32 %v1697, %v1885
        %v1954 = vmul.f32 %v1698, %v1890
        %v1955 = vmul.f32 %v1699, %v1890
        %v1956 = vadd.f32 %v1892, %v1894
        %v1957 = vadd.f32 %v1956, %v1896
        %v1958 = vadd.f32 %v1957, %v1898
        %v1959 = vadd.f32 %v1958, %v1900
        %v1960 = vadd.f32 %v1959, %v1902
        %v1961 = vadd.f32 %v1960, %v1904
        %v1962 = vadd.f32 %v1961, %v1906
        %v1963 = vadd.f32 %v1962, %v1908
        %v1964 = vadd.f32 %v1963, %v1910
        %v1965 = vadd.f32 %v1964, %v1912
        %v1966 = vadd.f32 %v1965, %v1914
        %v1967 = vadd.f32 %v1966, %v1916
        %v1968 = vadd.f32 %v1967, %v1918
        %v1969 = vadd.f32 %v1968, %v1920
        %v1970 = vadd.f32 %v1969, %v1922
        %v1971 = vadd.f32 %v1970, %v1924
        %v1972 = vadd.f32 %v1971, %v1926
        %v1973 = vadd.f32 %v1972, %v1928
        %v1974 = vadd.f32 %v1973, %v1930
        %v1975 = vadd.f32 %v1974, %v1932
        %v1976 = vadd.f32 %v1975, %v1934
        %v1977 = vadd.f32 %v1976, %v1936
        %v1978 = vadd.f32 %v1977, %v1938
        %v1979 = vadd.f32 %v1978, %v1940
        %v1980 = vadd.f32 %v1979, %v1942
        %v1981 = vadd.f32 %v1980, %v1944
        %v1982 = vadd.f32 %v1981, %v1946
        %v1983 = vadd.f32 %v1982, %v1948
        %v1984 = vadd.f32 %v1983, %v1950
        %v1985 = vadd.f32 %v1984, %v1952
        %v1986 = vadd.f32 %v1985, %v1954
        %v1987 = vrot.slane %v1986, 4
        %v1988 = vadd.f32 %v1986, %v1987
        %v1989 = vrot.slane %v1988, 2
        %v1990 = vadd.f32 %v1988, %v1989
        %v1991 = vrot.slane %v1990, 1
        %v1992 = vadd.f32 %v1990, %v1991
        %v1993 = vadd.f32 %v1893, %v1895
        %v1994 = vadd.f32 %v1993, %v1897
        %v1995 = vadd.f32 %v1994, %v1899
        %v1996 = vadd.f32 %v1995, %v1901
        %v1997 = vadd.f32 %v1996, %v1903
        %v1998 = vadd.f32 %v1997, %v1905
        %v1999 = vadd.f32 %v1998, %v1907
        %v2000 = vadd.f32 %v1999, %v1909
        %v2001 = vadd.f32 %v2000, %v1911
        %v2002 = vadd.f32 %v2001, %v1913
        %v2003 = vadd.f32 %v2002, %v1915
        %v2004 = vadd.f32 %v2003, %v1917
        %v2005 = vadd.f32 %v2004, %v1919
        %v2006 = vadd.f32 %v2005, %v1921
        %v2007 = vadd.f32 %v2006, %v1923
        %v2008 = vadd.f32 %v2007, %v1925
        %v2009 = vadd.f32 %v2008, %v1927
        %v2010 = vadd.f32 %v2009, %v1929
        %v2011 = vadd.f32 %v2010, %v1931
        %v2012 = vadd.f32 %v2011, %v1933
        %v2013 = vadd.f32 %v2012, %v1935
        %v2014 = vadd.f32 %v2013, %v1937
        %v2015 = vadd.f32 %v2014, %v1939
        %v2016 = vadd.f32 %v2015, %v1941
        %v2017 = vadd.f32 %v2016, %v1943
        %v2018 = vadd.f32 %v2017, %v1945
        %v2019 = vadd.f32 %v2018, %v1947
        %v2020 = vadd.f32 %v2019, %v1949
        %v2021 = vadd.f32 %v2020, %v1951
        %v2022 = vadd.f32 %v2021, %v1953
        %v2023 = vadd.f32 %v2022, %v1955
        %v2024 = vrot.slane %v2023, 4
        %v2025 = vadd.f32 %v2023, %v2024
        %v2026 = vrot.slane %v2025, 2
        %v2027 = vadd.f32 %v2025, %v2026
        %v2028 = vrot.slane %v2027, 1
        %v2029 = vadd.f32 %v2027, %v2028
        %v2032 = vcombine.low %v1992, %v2029
        %v2034 = vunpack.c.l.s4 1966171168
        %v2035 = vunpack.c.0.s8 %v2034
        %v2036 = vlaneseq
        %v2037 = vshrl.u32 %v2036, 7
        %v2038 = vsub.s32 %v2035, %v2037
        %v2039 = vrot.slane %v2032, %v2038
        %v2041 = vunpack.c.l.s4 1966171168
        %v2042 = vunpack.c.0.s8 %v2041
        %v2043 = vlaneseq
        %v2044 = vshrl.u32 %v2043, 7
        %v2045 = vsub.s32 %v2042, %v2044
        %v2046 = vrot.slane %v2039, %v2045
        %v2048 = vlaneseq
        %vm2049 = vcmp.ge.s32.totalorder %v2048, 0
        %vm2050 = vcmp.lt.s32.totalorder %v2048, 256
        %vm2051 = vmand %vm2049, %vm2050
        %2052 = vst.msk [vmem:[%s245] sm:$0x3] %vm2051, %v2046
        %s2053 = sand.u32 %s159, 1
        %s2054 = scalar_lea.sflag [#allocation3], %s2053
        %s2055 = sand.u32 %s159, 1
        %s2056 = smul.addr %s2055, 2
        %s2057 = scalar_lea.vmem [#allocation2], %s2056
        // Predicated region
        $region45: #{tpu_custom_call.1} parent=43 // pred_check
          %p2058 = pneg %p169
        $region46: #{tpu_custom_call.1} parent=43 // pred_check_branch
          %2060 = sbr.rel (%p2058) target = $region48
        $region47: #{tpu_custom_call.1} parent=43 // pred_region
          %s2061 = smul.u32 2, %s20
          %s2063 = ssub.s32 32, 32
          %2064 = vsyncadd %s2054, %s2063
          %s2065 = smul.addr %s2061, 16
          %s2066 = scalar_lea.hbm %s6, %s2065
          %s2068 = sshll.u32 %s2057, 4
          %s2069 = int_to_ptr.vmem [resolvable:$true] %s2068
          %2071 = dma.vmem_to_hbm [thread:$0]  %s2069, 32, %s2066, %s2054
        $region48: #{tpu_custom_call.1} parent=43 // pred_fallthru
          _
      $region44: #{tpu_custom_call.1} parent=5 // pred_fallthru
        _
      %p2072 = scmp.le.s32.totalorder 2, %s15
      // Predicated region
      $region49: #{tpu_custom_call.1} parent=5 // pred_check
        %p2073 = pneg %p2072
      $region50: #{tpu_custom_call.1} parent=5 // pred_check_branch
        %2075 = sbr.rel (%p2073) target = $region52
      $region51: #{tpu_custom_call.1} parent=5 // pred_region
        %s2076 = ssub.s32 %s15, 2
        // Predicated region
        $region53: #{tpu_custom_call.1} parent=51 // pred_check
          %p2077 = pneg %p175
        $region54: #{tpu_custom_call.1} parent=51 // pred_check_branch
          %2079 = sbr.rel (%p2077) target = $region56
        $region55: #{tpu_custom_call.1} parent=51 // pred_region
          %s2080 = sand.u32 %s160, 1
          %s2081 = scalar_lea.sflag [#allocation3], %s2080
          %s2082 = sand.u32 %s160, 1
          %s2083 = smul.addr %s2082, 2
          %s2084 = scalar_lea.vmem [#allocation2], %s2083
          %2085 = dma.done %s2081, 32
        $region56: #{tpu_custom_call.1} parent=51 // pred_fallthru
          _
      $region52: #{tpu_custom_call.1} parent=5 // pred_fallthru
        _
    $region6: #{tpu_custom_call.1} parent=1 // loop_footer
      %s19 = sadd.s32 1, %s15
    $region7: #{tpu_custom_call.1} parent=1 // loop_footer_branch
      %14 = sbr.rel target = $region3
    $region8: #{tpu_custom_call.1} parent=1 // loop_exit
      _
    %2086 = vsyncpa [#allocation3], 1
    %s2087 = scalar_lea.sflag [#allocation3], 1
    %2088 = vsyncpa %s2087, 1

</llo_original>
